<compile_context>
chip_gen: v5e
topology: v5e:2x2
jax: 0.10.0
libtpu: 0.0.40
codegen_flags: <defaults>
</compile_context>

<pallas_src>
import functools

import jax
import jax.numpy as jnp
import numpy as np
from jax.experimental import pallas as pl
from jax.experimental.pallas import tpu as pltpu


def _lstm_kernel(xp_ref,      # (Tc, Bp, 4H) bf16 : x @ W_ih0 + b0 (gate-permuted)
                 whh0_ref,    # (H, 4H)  bf16
                 wih1_ref,    # (H, 4H)  bf16
                 whh1_ref,    # (H, 4H)  bf16
                 b1_ref,      # (1, 4H)  f32 : b_ih1 + b_hh1
                 wfc_ref,     # (H, O)   f32
                 bfc_ref,     # (1, O)   f32
                 out_ref,     # (Bp, O)  f32
                 h1_ref, c1_ref, h2_ref, c2_ref,   # VMEM scratch (persist over grid)
                 *, t_total, t_chunk, mask_tail, unroll):
    t_idx = pl.program_id(0)
    Tc, Bp, G = xp_ref.shape
    H = G // 4

    # Initialize the recurrent state on the first T-chunk only.
    @pl.when(t_idx == 0)
    def _init():
        h1_ref[...] = jnp.zeros_like(h1_ref)
        c1_ref[...] = jnp.zeros_like(c1_ref)
        h2_ref[...] = jnp.zeros_like(h2_ref)
        c2_ref[...] = jnp.zeros_like(c2_ref)

    # Hoist constant loads / bias broadcast out of the time loop
    # (JAX does not CSE broadcast_in_dim inside loops).
    whh0 = whh0_ref[...]
    wih1 = wih1_ref[...]
    whh1 = whh1_ref[...]
    b1 = jnp.broadcast_to(b1_ref[...], (Bp, G))

    def gates_to_hc(g, c):
        # Gate layout after wrapper permutation: [i, f, o, g_cell].
        # One sigmoid over 3H lanes + one tanh over H lanes (2 EUP launches).
        sg = jax.nn.sigmoid(g[:, :3 * H])
        i = sg[:, 0 * H:1 * H]
        f = sg[:, 1 * H:2 * H]
        o = sg[:, 2 * H:3 * H]
        gc = jnp.tanh(g[:, 3 * H:4 * H])
        c_new = f * c + i * gc
        h_new = o * jnp.tanh(c_new)
        return h_new.astype(jnp.bfloat16), c_new

    def step(t, carry):
        h1, c1, h2, c2 = carry
        # Layer 0: precomputed input projection (bf16) + recurrent term (MXU, f32 acc).
        g0 = xp_ref[t].astype(jnp.float32) + jnp.dot(
            h1, whh0, preferred_element_type=jnp.float32)
        h1n, c1n = gates_to_hc(g0, c1)
        # Layer 1: two MXU pushes, no lane-direction concat on the critical path.
        g1 = (jnp.dot(h1n, wih1, preferred_element_type=jnp.float32)
              + jnp.dot(h2, whh1, preferred_element_type=jnp.float32) + b1)
        h2n, c2n = gates_to_hc(g1, c2)
        if mask_tail:
            # Padded tail timesteps (T not divisible by Tc) must not update state.
            keep = (t_idx * t_chunk + t) < t_total
            h1n = jnp.where(keep, h1n, h1)
            c1n = jnp.where(keep, c1n, c1)
            h2n = jnp.where(keep, h2n, h2)
            c2n = jnp.where(keep, c2n, c2)
        return (h1n, c1n, h2n, c2n)

    carry0 = (h1_ref[...], c1_ref[...], h2_ref[...], c2_ref[...])
    h1, c1, h2, c2 = jax.lax.fori_loop(0, Tc, step, carry0, unroll=unroll)

    # Persist state for the next T-chunk.
    h1_ref[...] = h1
    c1_ref[...] = c1
    h2_ref[...] = h2
    c2_ref[...] = c2

    # Final Linear on the last timestep's top-layer hidden state (runs once).
    @pl.when(t_idx == pl.num_programs(0) - 1)
    def _final():
        out_ref[...] = (jnp.dot(h2.astype(jnp.float32), wfc_ref[...],
                                preferred_element_type=jnp.float32)
                        + bfc_ref[...]).astype(out_ref.dtype)


def _permute_gates(w):
    """PyTorch gate order [i, f, g, o] -> kernel order [i, f, o, g] (last axis)."""
    i, f, g, o = jnp.split(w, 4, axis=-1)
    return jnp.concatenate([i, f, o, g], axis=-1)


def lstm_forward(x, params, *, t_chunk=None):
    """x: (B, T, input_size) float32, batch_first (PyTorch convention)."""
    B, T, _ = x.shape
    H = params["whh0"].shape[0]
    O = params["wfc"].shape[1]
    G = 4 * H

    SUB = 16                                   # bf16 sublane packing
    Bp = max(((B + SUB - 1) // SUB) * SUB, SUB)

    # One-time weight prep (gate permutation + bf16 cast for MXU operands).
    wih0 = _permute_gates(params["wih0"])
    b0 = _permute_gates(params["b0"])
    whh0 = _permute_gates(params["whh0"]).astype(jnp.bfloat16)
    wih1 = _permute_gates(params["wih1"]).astype(jnp.bfloat16)
    whh1 = _permute_gates(params["whh1"]).astype(jnp.bfloat16)
    b1 = _permute_gates(params["b1"]).astype(jnp.float32)
    wfc = params["wfc"].astype(jnp.float32)
    bfc = params["bfc"].astype(jnp.float32)

    # Precompute the layer-0 input projection for ALL timesteps with the batch
    # already padded and the output already in (T, Bp, 4H) layout; store bf16.
    xb = jnp.pad(x, ((0, Bp - B), (0, 0), (0, 0)))
    xp = (jnp.einsum("bti,ig->tbg", xb, wih0) + b0).astype(jnp.bfloat16)

    # Choose a T-chunk (~1 MiB of bf16 xp per chunk, capped at 256 steps).
    if t_chunk is None:
        bytes_per_step = Bp * G * 2
        t_chunk = max(1, min(T, min(256, (1 << 20) // max(bytes_per_step, 1))))
    Tc = int(t_chunk)
    n_chunks = -(-T // Tc)
    Tp = n_chunks * Tc
    mask_tail = (Tp != T)
    if mask_tail:
        xp = jnp.pad(xp, ((0, Tp - T), (0, 0), (0, 0)))

    # Explicit scoped-VMEM budget (double-buffered xp chunk + weights + state).
    weight_bytes = (whh0.size + wih1.size + whh1.size) * 2 \
        + (b1.size + wfc.size + bfc.size) * 4
    xp_chunk_bytes = Tc * Bp * G * 2
    scratch_bytes = 2 * Bp * H * 2 + 2 * Bp * H * 4
    vmem_limit = int(2 * xp_chunk_bytes + 2 * weight_bytes + scratch_bytes
                     + 2 * Bp * O * 4 + (4 << 20))
    vmem_limit = min(max(vmem_limit, 16 << 20), 128 << 20)

    kernel = functools.partial(
        _lstm_kernel, t_total=T, t_chunk=Tc, mask_tail=mask_tail,
        unroll=(Tc if Tc <= 8 else 4))   # modest unroll: avoid vreg spills at big H

    grid_spec = pltpu.PrefetchScalarGridSpec(
        num_scalar_prefetch=0,
        grid=(n_chunks,),
        in_specs=[
            pl.BlockSpec((Tc, Bp, G), lambda t: (t, 0, 0)),   # streamed xp chunks
            pl.BlockSpec((H, G), lambda t: (0, 0)),
            pl.BlockSpec((H, G), lambda t: (0, 0)),
            pl.BlockSpec((H, G), lambda t: (0, 0)),
            pl.BlockSpec((1, G), lambda t: (0, 0)),
            pl.BlockSpec((H, O), lambda t: (0, 0)),
            pl.BlockSpec((1, O), lambda t: (0, 0)),
        ],
        out_specs=pl.BlockSpec((Bp, O), lambda t: (0, 0)),
        scratch_shapes=[
            pltpu.VMEM((Bp, H), jnp.bfloat16),   # h1
            pltpu.VMEM((Bp, H), jnp.float32),    # c1
            pltpu.VMEM((Bp, H), jnp.bfloat16),   # h2
            pltpu.VMEM((Bp, H), jnp.float32),    # c2
        ],
    )

    out = pl.pallas_call(
        kernel,
        out_shape=jax.ShapeDtypeStruct((Bp, O), jnp.float32),
        grid_spec=grid_spec,
        compiler_params=pltpu.CompilerParams(
            dimension_semantics=("arbitrary",),   # time recurrence is sequential
            vmem_limit_bytes=vmem_limit,
        ),
    )(xp, whh0, wih1, whh1, b1, wfc, bfc)

    return out[:B]


def make_params(key, input_size, hidden_size, output_size):
    """Deterministic init mimicking PyTorch's U(-1/sqrt(H), 1/sqrt(H)).
    Weights are stored transposed (in, 4H) in PyTorch gate order [i, f, g, o]."""
    H = hidden_size
    bound = 1.0 / np.sqrt(H)
    ks = jax.random.split(key, 10)
    u = lambda k, shape: jax.random.uniform(k, shape, jnp.float32, -bound, bound)

    wih0 = u(ks[0], (input_size, 4 * H))
    whh0 = u(ks[1], (H, 4 * H))
    b0 = u(ks[2], (1, 4 * H)) + u(ks[3], (1, 4 * H))   # b_ih0 + b_hh0
    wih1 = u(ks[4], (H, 4 * H))
    whh1 = u(ks[5], (H, 4 * H))
    b1 = u(ks[6], (1, 4 * H)) + u(ks[7], (1, 4 * H))   # b_ih1 + b_hh1
    wfc = u(ks[8], (H, output_size))
    bfc = u(ks[9], (1, output_size))
    return dict(wih0=wih0, whh0=whh0, b0=b0,
                wih1=wih1, whh1=whh1, b1=b1,
                wfc=wfc, bfc=bfc)


def reference_forward(x, params):
    """Pure-JAX reference using PyTorch gate order [i,f,g,o] and the same
    bf16-operand / f32-accumulation semantics as the kernel."""
    B, T, _ = x.shape
    H = params["whh0"].shape[0]
    f32, bf16 = jnp.float32, jnp.bfloat16

    whh0 = params["whh0"].astype(bf16)
    wih1 = params["wih1"].astype(bf16)
    whh1 = params["whh1"].astype(bf16)
    b1 = params["b1"].astype(f32)

    xp = (jnp.einsum("bti,ig->tbg", x, params["wih0"]) + params["b0"]).astype(bf16)

    def gates_to_hc(g, c):
        i = jax.nn.sigmoid(g[:, :H])
        f = jax.nn.sigmoid(g[:, H:2 * H])
        gg = jnp.tanh(g[:, 2 * H:3 * H])
        o = jax.nn.sigmoid(g[:, 3 * H:])
        c = f * c + i * gg
        return (o * jnp.tanh(c)).astype(bf16), c

    def step(carry, xp_t):
        h1, c1, h2, c2 = carry
        g0 = xp_t.astype(f32) + jnp.dot(h1, whh0, preferred_element_type=f32)
        h1, c1 = gates_to_hc(g0, c1)
        g1 = (jnp.dot(h1, wih1, preferred_element_type=f32)
              + jnp.dot(h2, whh1, preferred_element_type=f32) + b1)
        h2, c2 = gates_to_hc(g1, c2)
        return (h1, c1, h2, c2), None

    zb = jnp.zeros((B, H), bf16)
    zf = jnp.zeros((B, H), f32)
    (_, _, h2, _), _ = jax.lax.scan(step, (zb, zf, zb, zf), xp)
    return h2.astype(f32) @ params["wfc"] + params["bfc"]


if __name__ == "__main__":
    B, T, I, H, O = 2, 8, 1, 32, 1
    key = jax.random.PRNGKey(0)
    kx, kp = jax.random.split(key)
    x = jax.random.normal(kx, (B, T, I), jnp.float32)
    params = make_params(kp, I, H, O)

    out = jax.block_until_ready(lstm_forward(x, params))
    ref = jax.block_until_ready(reference_forward(x, params))

    np.testing.assert_allclose(np.asarray(out), np.asarray(ref),
                               rtol=5e-3, atol=5e-3)
    print("KERNEL_OK")
</pallas_src>

<mosaic_0001>
module attributes {stable_mosaic.version = 11 : i64} {
  func.func @_lstm_kernel(%arg0: i32, %arg1: memref<8x16x128xbf16, #tpu.memory_space<vmem>>, %arg2: memref<32x128xbf16, #tpu.memory_space<vmem>>, %arg3: memref<32x128xbf16, #tpu.memory_space<vmem>>, %arg4: memref<32x128xbf16, #tpu.memory_space<vmem>>, %arg5: memref<1x128xf32, #tpu.memory_space<vmem>>, %arg6: memref<32x1xf32, #tpu.memory_space<vmem>>, %arg7: memref<1x1xf32, #tpu.memory_space<vmem>>, %arg8: memref<16x1xf32, #tpu.memory_space<vmem>>, %arg9: memref<16x32xbf16, #tpu.memory_space<vmem>>, %arg10: memref<16x32xf32, #tpu.memory_space<vmem>>, %arg11: memref<16x32xbf16, #tpu.memory_space<vmem>>, %arg12: memref<16x32xf32, #tpu.memory_space<vmem>>) attributes {dimension_semantics = [#tpu.dimension_semantics<arbitrary>], iteration_bounds = array<i64: 1>, scalar_prefetch = 0 : i64, scratch_operands = 4 : i64, tpu.core_type = #tpu.core_type<tc>, window_params = [{transform_indices = @transform_0, window_bounds = array<i64: 8, 16, 128>}, {pipeline_mode = #tpu.pipeline_mode<synchronous>, transform_indices = @transform_1, window_bounds = array<i64: 32, 128>}, {pipeline_mode = #tpu.pipeline_mode<synchronous>, transform_indices = @transform_2, window_bounds = array<i64: 32, 128>}, {pipeline_mode = #tpu.pipeline_mode<synchronous>, transform_indices = @transform_3, window_bounds = array<i64: 32, 128>}, {pipeline_mode = #tpu.pipeline_mode<synchronous>, transform_indices = @transform_4, window_bounds = array<i64: 1, 128>}, {pipeline_mode = #tpu.pipeline_mode<synchronous>, transform_indices = @transform_5, window_bounds = array<i64: 32, 1>}, {pipeline_mode = #tpu.pipeline_mode<synchronous>, transform_indices = @transform_6, window_bounds = array<i64: 1, 1>}, {pipeline_mode = #tpu.pipeline_mode<synchronous>, transform_indices = @transform_7, window_bounds = array<i64: 16, 1>}]} {
    %c0_i32 = arith.constant 0 : i32
    %0 = arith.cmpi eq, %arg0, %c0_i32 : i32
    %1 = arith.extui %0 : i1 to i32
    %c0_i32_0 = arith.constant 0 : i32
    %2 = arith.cmpi ne, %1, %c0_i32_0 : i32
    scf.if %2 {
      %cst_82 = arith.constant 0.000000e+00 : bf16
      %372 = vector.broadcast %cst_82 : bf16 to vector<16x32xbf16>
      %c0_83 = arith.constant 0 : index
      %c0_84 = arith.constant 0 : index
      %373 = vector.load %arg9[%c0_83, %c0_84] : memref<16x32xbf16, #tpu.memory_space<vmem>>, vector<16x32xbf16>
      tpu.vector_store %arg9[%c0_83, %c0_84], %372 {strides = array<i32>} : memref<16x32xbf16, #tpu.memory_space<vmem>>, vector<16x32xbf16>,
      %cst_85 = arith.constant 0.000000e+00 : f32
      %374 = vector.broadcast %cst_85 : f32 to vector<16x32xf32>
      %c0_86 = arith.constant 0 : index
      %c0_87 = arith.constant 0 : index
      %375 = vector.load %arg10[%c0_86, %c0_87] : memref<16x32xf32, #tpu.memory_space<vmem>>, vector<16x32xf32>
      tpu.vector_store %arg10[%c0_86, %c0_87], %374 {strides = array<i32>} : memref<16x32xf32, #tpu.memory_space<vmem>>, vector<16x32xf32>,
      %cst_88 = arith.constant 0.000000e+00 : bf16
      %376 = vector.broadcast %cst_88 : bf16 to vector<16x32xbf16>
      %c0_89 = arith.constant 0 : index
      %c0_90 = arith.constant 0 : index
      %377 = vector.load %arg11[%c0_89, %c0_90] : memref<16x32xbf16, #tpu.memory_space<vmem>>, vector<16x32xbf16>
      tpu.vector_store %arg11[%c0_89, %c0_90], %376 {strides = array<i32>} : memref<16x32xbf16, #tpu.memory_space<vmem>>, vector<16x32xbf16>,
      %cst_91 = arith.constant 0.000000e+00 : f32
      %378 = vector.broadcast %cst_91 : f32 to vector<16x32xf32>
      %c0_92 = arith.constant 0 : index
      %c0_93 = arith.constant 0 : index
      %379 = vector.load %arg12[%c0_92, %c0_93] : memref<16x32xf32, #tpu.memory_space<vmem>>, vector<16x32xf32>
      tpu.vector_store %arg12[%c0_92, %c0_93], %378 {strides = array<i32>} : memref<16x32xf32, #tpu.memory_space<vmem>>, vector<16x32xf32>,
    } else {
    }
    %c0 = arith.constant 0 : index
    %c0_1 = arith.constant 0 : index
    %3 = vector.load %arg2[%c0, %c0_1] : memref<32x128xbf16, #tpu.memory_space<vmem>>, vector<32x128xbf16>
    %c0_2 = arith.constant 0 : index
    %c0_3 = arith.constant 0 : index
    %4 = vector.load %arg3[%c0_2, %c0_3] : memref<32x128xbf16, #tpu.memory_space<vmem>>, vector<32x128xbf16>
    %c0_4 = arith.constant 0 : index
    %c0_5 = arith.constant 0 : index
    %5 = vector.load %arg4[%c0_4, %c0_5] : memref<32x128xbf16, #tpu.memory_space<vmem>>, vector<32x128xbf16>
    %c0_6 = arith.constant 0 : index
    %c0_7 = arith.constant 0 : index
    %6 = vector.load %arg5[%c0_6, %c0_7] : memref<1x128xf32, #tpu.memory_space<vmem>>, vector<1x128xf32>
    %7 = vector.shape_cast %6 : vector<1x128xf32> to vector<1x128xf32>
    %8 = vector.broadcast %7 : vector<1x128xf32> to vector<16x128xf32>
    %c0_8 = arith.constant 0 : index
    %c0_9 = arith.constant 0 : index
    %9 = vector.load %arg9[%c0_8, %c0_9] : memref<16x32xbf16, #tpu.memory_space<vmem>>, vector<16x32xbf16>
    %c0_10 = arith.constant 0 : index
    %c0_11 = arith.constant 0 : index
    %10 = vector.load %arg10[%c0_10, %c0_11] : memref<16x32xf32, #tpu.memory_space<vmem>>, vector<16x32xf32>
    %c0_12 = arith.constant 0 : index
    %c0_13 = arith.constant 0 : index
    %11 = vector.load %arg11[%c0_12, %c0_13] : memref<16x32xbf16, #tpu.memory_space<vmem>>, vector<16x32xbf16>
    %c0_14 = arith.constant 0 : index
    %c0_15 = arith.constant 0 : index
    %12 = vector.load %arg12[%c0_14, %c0_15] : memref<16x32xf32, #tpu.memory_space<vmem>>, vector<16x32xf32>
    %c0_i32_16 = arith.constant 0 : i32
    %13 = arith.index_cast %c0_i32_16 : i32 to index
    %c0_17 = arith.constant 0 : index
    %c0_18 = arith.constant 0 : index
    %14 = vector.load %arg1[%13, %c0_17, %c0_18] : memref<8x16x128xbf16, #tpu.memory_space<vmem>>, vector<1x16x128xbf16>
    %15 = vector.shape_cast %14 : vector<1x16x128xbf16> to vector<16x128xbf16>
    %16 = arith.extf %15 : vector<16x128xbf16> to vector<16x128xf32>
    %cst = arith.constant dense<0.000000e+00> : vector<16x128xf32>
    %17 = tpu.matmul %9, %3, %cst {dimension_numbers = #tpu.dot_dimension_numbers<[1], [0], [0], [1], [0, 0, 1, 1], [], []>} : vector<16x32xbf16>, vector<32x128xbf16>, vector<16x128xf32> -> vector<16x128xf32>
    %18 = arith.addf %16, %17 : vector<16x128xf32>
    %19 = vector.extract_strided_slice %18 {offsets = [0, 0], sizes = [16, 96], strides = [1, 1]} : vector<16x128xf32> to vector<16x96xf32>
    %20 = arith.negf %19 : vector<16x96xf32>
    %21 = math.exp %20 : vector<16x96xf32>
    %cst_19 = arith.constant 1.000000e+00 : f32
    %22 = vector.broadcast %cst_19 : f32 to vector<16x96xf32>
    %23 = arith.addf %22, %21 : vector<16x96xf32>
    %24 = arith.divf %22, %23 : vector<16x96xf32>
    %25 = vector.extract_strided_slice %24 {offsets = [0, 0], sizes = [16, 32], strides = [1, 1]} : vector<16x96xf32> to vector<16x32xf32>
    %26 = vector.extract_strided_slice %24 {offsets = [0, 32], sizes = [16, 32], strides = [1, 1]} : vector<16x96xf32> to vector<16x32xf32>
    %27 = vector.extract_strided_slice %24 {offsets = [0, 64], sizes = [16, 32], strides = [1, 1]} : vector<16x96xf32> to vector<16x32xf32>
    %28 = vector.extract_strided_slice %18 {offsets = [0, 96], sizes = [16, 32], strides = [1, 1]} : vector<16x128xf32> to vector<16x32xf32>
    %29 = math.tanh %28 : vector<16x32xf32>
    %30 = arith.mulf %26, %10 : vector<16x32xf32>
    %31 = arith.mulf %25, %29 : vector<16x32xf32>
    %32 = arith.addf %30, %31 : vector<16x32xf32>
    %33 = math.tanh %32 : vector<16x32xf32>
    %34 = arith.mulf %27, %33 : vector<16x32xf32>
    %35 = arith.truncf %34 : vector<16x32xf32> to vector<16x32xbf16>
    %cst_20 = arith.constant dense<0.000000e+00> : vector<16x128xf32>
    %36 = tpu.matmul %35, %4, %cst_20 {dimension_numbers = #tpu.dot_dimension_numbers<[1], [0], [0], [1], [0, 0, 1, 1], [], []>} : vector<16x32xbf16>, vector<32x128xbf16>, vector<16x128xf32> -> vector<16x128xf32>
    %cst_21 = arith.constant dense<0.000000e+00> : vector<16x128xf32>
    %37 = tpu.matmul %11, %5, %cst_21 {dimension_numbers = #tpu.dot_dimension_numbers<[1], [0], [0], [1], [0, 0, 1, 1], [], []>} : vector<16x32xbf16>, vector<32x128xbf16>, vector<16x128xf32> -> vector<16x128xf32>
    %38 = arith.addf %36, %37 : vector<16x128xf32>
    %39 = arith.addf %38, %8 : vector<16x128xf32>
    %40 = vector.extract_strided_slice %39 {offsets = [0, 0], sizes = [16, 96], strides = [1, 1]} : vector<16x128xf32> to vector<16x96xf32>
    %41 = arith.negf %40 : vector<16x96xf32>
    %42 = math.exp %41 : vector<16x96xf32>
    %cst_22 = arith.constant 1.000000e+00 : f32
    %43 = vector.broadcast %cst_22 : f32 to vector<16x96xf32>
    %44 = arith.addf %43, %42 : vector<16x96xf32>
    %45 = arith.divf %43, %44 : vector<16x96xf32>
    %46 = vector.extract_strided_slice %45 {offsets = [0, 0], sizes = [16, 32], strides = [1, 1]} : vector<16x96xf32> to vector<16x32xf32>
    %47 = vector.extract_strided_slice %45 {offsets = [0, 32], sizes = [16, 32], strides = [1, 1]} : vector<16x96xf32> to vector<16x32xf32>
    %48 = vector.extract_strided_slice %45 {offsets = [0, 64], sizes = [16, 32], strides = [1, 1]} : vector<16x96xf32> to vector<16x32xf32>
    %49 = vector.extract_strided_slice %39 {offsets = [0, 96], sizes = [16, 32], strides = [1, 1]} : vector<16x128xf32> to vector<16x32xf32>
    %50 = math.tanh %49 : vector<16x32xf32>
    %51 = arith.mulf %47, %12 : vector<16x32xf32>
    %52 = arith.mulf %46, %50 : vector<16x32xf32>
    %53 = arith.addf %51, %52 : vector<16x32xf32>
    %54 = math.tanh %53 : vector<16x32xf32>
    %55 = arith.mulf %48, %54 : vector<16x32xf32>
    %56 = arith.truncf %55 : vector<16x32xf32> to vector<16x32xbf16>
    %c1_i32 = arith.constant 1 : i32
    %57 = arith.index_cast %c1_i32 : i32 to index
    %c0_23 = arith.constant 0 : index
    %c0_24 = arith.constant 0 : index
    %58 = vector.load %arg1[%57, %c0_23, %c0_24] : memref<8x16x128xbf16, #tpu.memory_space<vmem>>, vector<1x16x128xbf16>
    %59 = vector.shape_cast %58 : vector<1x16x128xbf16> to vector<16x128xbf16>
    %60 = arith.extf %59 : vector<16x128xbf16> to vector<16x128xf32>
    %cst_25 = arith.constant dense<0.000000e+00> : vector<16x128xf32>
    %61 = tpu.matmul %35, %3, %cst_25 {dimension_numbers = #tpu.dot_dimension_numbers<[1], [0], [0], [1], [0, 0, 1, 1], [], []>} : vector<16x32xbf16>, vector<32x128xbf16>, vector<16x128xf32> -> vector<16x128xf32>
    %62 = arith.addf %60, %61 : vector<16x128xf32>
    %63 = vector.extract_strided_slice %62 {offsets = [0, 0], sizes = [16, 96], strides = [1, 1]} : vector<16x128xf32> to vector<16x96xf32>
    %64 = arith.negf %63 : vector<16x96xf32>
    %65 = math.exp %64 : vector<16x96xf32>
    %cst_26 = arith.constant 1.000000e+00 : f32
    %66 = vector.broadcast %cst_26 : f32 to vector<16x96xf32>
    %67 = arith.addf %66, %65 : vector<16x96xf32>
    %68 = arith.divf %66, %67 : vector<16x96xf32>
    %69 = vector.extract_strided_slice %68 {offsets = [0, 0], sizes = [16, 32], strides = [1, 1]} : vector<16x96xf32> to vector<16x32xf32>
    %70 = vector.extract_strided_slice %68 {offsets = [0, 32], sizes = [16, 32], strides = [1, 1]} : vector<16x96xf32> to vector<16x32xf32>
    %71 = vector.extract_strided_slice %68 {offsets = [0, 64], sizes = [16, 32], strides = [1, 1]} : vector<16x96xf32> to vector<16x32xf32>
    %72 = vector.extract_strided_slice %62 {offsets = [0, 96], sizes = [16, 32], strides = [1, 1]} : vector<16x128xf32> to vector<16x32xf32>
    %73 = math.tanh %72 : vector<16x32xf32>
    %74 = arith.mulf %70, %32 : vector<16x32xf32>
    %75 = arith.mulf %69, %73 : vector<16x32xf32>
    %76 = arith.addf %74, %75 : vector<16x32xf32>
    %77 = math.tanh %76 : vector<16x32xf32>
    %78 = arith.mulf %71, %77 : vector<16x32xf32>
    %79 = arith.truncf %78 : vector<16x32xf32> to vector<16x32xbf16>
    %cst_27 = arith.constant dense<0.000000e+00> : vector<16x128xf32>
    %80 = tpu.matmul %79, %4, %cst_27 {dimension_numbers = #tpu.dot_dimension_numbers<[1], [0], [0], [1], [0, 0, 1, 1], [], []>} : vector<16x32xbf16>, vector<32x128xbf16>, vector<16x128xf32> -> vector<16x128xf32>
    %cst_28 = arith.constant dense<0.000000e+00> : vector<16x128xf32>
    %81 = tpu.matmul %56, %5, %cst_28 {dimension_numbers = #tpu.dot_dimension_numbers<[1], [0], [0], [1], [0, 0, 1, 1], [], []>} : vector<16x32xbf16>, vector<32x128xbf16>, vector<16x128xf32> -> vector<16x128xf32>
    %82 = arith.addf %80, %81 : vector<16x128xf32>
    %83 = arith.addf %82, %8 : vector<16x128xf32>
    %84 = vector.extract_strided_slice %83 {offsets = [0, 0], sizes = [16, 96], strides = [1, 1]} : vector<16x128xf32> to vector<16x96xf32>
    %85 = arith.negf %84 : vector<16x96xf32>
    %86 = math.exp %85 : vector<16x96xf32>
    %cst_29 = arith.constant 1.000000e+00 : f32
    %87 = vector.broadcast %cst_29 : f32 to vector<16x96xf32>
    %88 = arith.addf %87, %86 : vector<16x96xf32>
    %89 = arith.divf %87, %88 : vector<16x96xf32>
    %90 = vector.extract_strided_slice %89 {offsets = [0, 0], sizes = [16, 32], strides = [1, 1]} : vector<16x96xf32> to vector<16x32xf32>
    %91 = vector.extract_strided_slice %89 {offsets = [0, 32], sizes = [16, 32], strides = [1, 1]} : vector<16x96xf32> to vector<16x32xf32>
    %92 = vector.extract_strided_slice %89 {offsets = [0, 64], sizes = [16, 32], strides = [1, 1]} : vector<16x96xf32> to vector<16x32xf32>
    %93 = vector.extract_strided_slice %83 {offsets = [0, 96], sizes = [16, 32], strides = [1, 1]} : vector<16x128xf32> to vector<16x32xf32>
    %94 = math.tanh %93 : vector<16x32xf32>
    %95 = arith.mulf %91, %53 : vector<16x32xf32>
    %96 = arith.mulf %90, %94 : vector<16x32xf32>
    %97 = arith.addf %95, %96 : vector<16x32xf32>
    %98 = math.tanh %97 : vector<16x32xf32>
    %99 = arith.mulf %92, %98 : vector<16x32xf32>
    %100 = arith.truncf %99 : vector<16x32xf32> to vector<16x32xbf16>
    %c2_i32 = arith.constant 2 : i32
    %101 = arith.index_cast %c2_i32 : i32 to index
    %c0_30 = arith.constant 0 : index
    %c0_31 = arith.constant 0 : index
    %102 = vector.load %arg1[%101, %c0_30, %c0_31] : memref<8x16x128xbf16, #tpu.memory_space<vmem>>, vector<1x16x128xbf16>
    %103 = vector.shape_cast %102 : vector<1x16x128xbf16> to vector<16x128xbf16>
    %104 = arith.extf %103 : vector<16x128xbf16> to vector<16x128xf32>
    %cst_32 = arith.constant dense<0.000000e+00> : vector<16x128xf32>
    %105 = tpu.matmul %79, %3, %cst_32 {dimension_numbers = #tpu.dot_dimension_numbers<[1], [0], [0], [1], [0, 0, 1, 1], [], []>} : vector<16x32xbf16>, vector<32x128xbf16>, vector<16x128xf32> -> vector<16x128xf32>
    %106 = arith.addf %104, %105 : vector<16x128xf32>
    %107 = vector.extract_strided_slice %106 {offsets = [0, 0], sizes = [16, 96], strides = [1, 1]} : vector<16x128xf32> to vector<16x96xf32>
    %108 = arith.negf %107 : vector<16x96xf32>
    %109 = math.exp %108 : vector<16x96xf32>
    %cst_33 = arith.constant 1.000000e+00 : f32
    %110 = vector.broadcast %cst_33 : f32 to vector<16x96xf32>
    %111 = arith.addf %110, %109 : vector<16x96xf32>
    %112 = arith.divf %110, %111 : vector<16x96xf32>
    %113 = vector.extract_strided_slice %112 {offsets = [0, 0], sizes = [16, 32], strides = [1, 1]} : vector<16x96xf32> to vector<16x32xf32>
    %114 = vector.extract_strided_slice %112 {offsets = [0, 32], sizes = [16, 32], strides = [1, 1]} : vector<16x96xf32> to vector<16x32xf32>
    %115 = vector.extract_strided_slice %112 {offsets = [0, 64], sizes = [16, 32], strides = [1, 1]} : vector<16x96xf32> to vector<16x32xf32>
    %116 = vector.extract_strided_slice %106 {offsets = [0, 96], sizes = [16, 32], strides = [1, 1]} : vector<16x128xf32> to vector<16x32xf32>
    %117 = math.tanh %116 : vector<16x32xf32>
    %118 = arith.mulf %114, %76 : vector<16x32xf32>
    %119 = arith.mulf %113, %117 : vector<16x32xf32>
    %120 = arith.addf %118, %119 : vector<16x32xf32>
    %121 = math.tanh %120 : vector<16x32xf32>
    %122 = arith.mulf %115, %121 : vector<16x32xf32>
    %123 = arith.truncf %122 : vector<16x32xf32> to vector<16x32xbf16>
    %cst_34 = arith.constant dense<0.000000e+00> : vector<16x128xf32>
    %124 = tpu.matmul %123, %4, %cst_34 {dimension_numbers = #tpu.dot_dimension_numbers<[1], [0], [0], [1], [0, 0, 1, 1], [], []>} : vector<16x32xbf16>, vector<32x128xbf16>, vector<16x128xf32> -> vector<16x128xf32>
    %cst_35 = arith.constant dense<0.000000e+00> : vector<16x128xf32>
    %125 = tpu.matmul %100, %5, %cst_35 {dimension_numbers = #tpu.dot_dimension_numbers<[1], [0], [0], [1], [0, 0, 1, 1], [], []>} : vector<16x32xbf16>, vector<32x128xbf16>, vector<16x128xf32> -> vector<16x128xf32>
    %126 = arith.addf %124, %125 : vector<16x128xf32>
    %127 = arith.addf %126, %8 : vector<16x128xf32>
    %128 = vector.extract_strided_slice %127 {offsets = [0, 0], sizes = [16, 96], strides = [1, 1]} : vector<16x128xf32> to vector<16x96xf32>
    %129 = arith.negf %128 : vector<16x96xf32>
    %130 = math.exp %129 : vector<16x96xf32>
    %cst_36 = arith.constant 1.000000e+00 : f32
    %131 = vector.broadcast %cst_36 : f32 to vector<16x96xf32>
    %132 = arith.addf %131, %130 : vector<16x96xf32>
    %133 = arith.divf %131, %132 : vector<16x96xf32>
    %134 = vector.extract_strided_slice %133 {offsets = [0, 0], sizes = [16, 32], strides = [1, 1]} : vector<16x96xf32> to vector<16x32xf32>
    %135 = vector.extract_strided_slice %133 {offsets = [0, 32], sizes = [16, 32], strides = [1, 1]} : vector<16x96xf32> to vector<16x32xf32>
    %136 = vector.extract_strided_slice %133 {offsets = [0, 64], sizes = [16, 32], strides = [1, 1]} : vector<16x96xf32> to vector<16x32xf32>
    %137 = vector.extract_strided_slice %127 {offsets = [0, 96], sizes = [16, 32], strides = [1, 1]} : vector<16x128xf32> to vector<16x32xf32>
    %138 = math.tanh %137 : vector<16x32xf32>
    %139 = arith.mulf %135, %97 : vector<16x32xf32>
    %140 = arith.mulf %134, %138 : vector<16x32xf32>
    %141 = arith.addf %139, %140 : vector<16x32xf32>
    %142 = math.tanh %141 : vector<16x32xf32>
    %143 = arith.mulf %136, %142 : vector<16x32xf32>
    %144 = arith.truncf %143 : vector<16x32xf32> to vector<16x32xbf16>
    %c3_i32 = arith.constant 3 : i32
    %145 = arith.index_cast %c3_i32 : i32 to index
    %c0_37 = arith.constant 0 : index
    %c0_38 = arith.constant 0 : index
    %146 = vector.load %arg1[%145, %c0_37, %c0_38] : memref<8x16x128xbf16, #tpu.memory_space<vmem>>, vector<1x16x128xbf16>
    %147 = vector.shape_cast %146 : vector<1x16x128xbf16> to vector<16x128xbf16>
    %148 = arith.extf %147 : vector<16x128xbf16> to vector<16x128xf32>
    %cst_39 = arith.constant dense<0.000000e+00> : vector<16x128xf32>
    %149 = tpu.matmul %123, %3, %cst_39 {dimension_numbers = #tpu.dot_dimension_numbers<[1], [0], [0], [1], [0, 0, 1, 1], [], []>} : vector<16x32xbf16>, vector<32x128xbf16>, vector<16x128xf32> -> vector<16x128xf32>
    %150 = arith.addf %148, %149 : vector<16x128xf32>
    %151 = vector.extract_strided_slice %150 {offsets = [0, 0], sizes = [16, 96], strides = [1, 1]} : vector<16x128xf32> to vector<16x96xf32>
    %152 = arith.negf %151 : vector<16x96xf32>
    %153 = math.exp %152 : vector<16x96xf32>
    %cst_40 = arith.constant 1.000000e+00 : f32
    %154 = vector.broadcast %cst_40 : f32 to vector<16x96xf32>
    %155 = arith.addf %154, %153 : vector<16x96xf32>
    %156 = arith.divf %154, %155 : vector<16x96xf32>
    %157 = vector.extract_strided_slice %156 {offsets = [0, 0], sizes = [16, 32], strides = [1, 1]} : vector<16x96xf32> to vector<16x32xf32>
    %158 = vector.extract_strided_slice %156 {offsets = [0, 32], sizes = [16, 32], strides = [1, 1]} : vector<16x96xf32> to vector<16x32xf32>
    %159 = vector.extract_strided_slice %156 {offsets = [0, 64], sizes = [16, 32], strides = [1, 1]} : vector<16x96xf32> to vector<16x32xf32>
    %160 = vector.extract_strided_slice %150 {offsets = [0, 96], sizes = [16, 32], strides = [1, 1]} : vector<16x128xf32> to vector<16x32xf32>
    %161 = math.tanh %160 : vector<16x32xf32>
    %162 = arith.mulf %158, %120 : vector<16x32xf32>
    %163 = arith.mulf %157, %161 : vector<16x32xf32>
    %164 = arith.addf %162, %163 : vector<16x32xf32>
    %165 = math.tanh %164 : vector<16x32xf32>
    %166 = arith.mulf %159, %165 : vector<16x32xf32>
    %167 = arith.truncf %166 : vector<16x32xf32> to vector<16x32xbf16>
    %cst_41 = arith.constant dense<0.000000e+00> : vector<16x128xf32>
    %168 = tpu.matmul %167, %4, %cst_41 {dimension_numbers = #tpu.dot_dimension_numbers<[1], [0], [0], [1], [0, 0, 1, 1], [], []>} : vector<16x32xbf16>, vector<32x128xbf16>, vector<16x128xf32> -> vector<16x128xf32>
    %cst_42 = arith.constant dense<0.000000e+00> : vector<16x128xf32>
    %169 = tpu.matmul %144, %5, %cst_42 {dimension_numbers = #tpu.dot_dimension_numbers<[1], [0], [0], [1], [0, 0, 1, 1], [], []>} : vector<16x32xbf16>, vector<32x128xbf16>, vector<16x128xf32> -> vector<16x128xf32>
    %170 = arith.addf %168, %169 : vector<16x128xf32>
    %171 = arith.addf %170, %8 : vector<16x128xf32>
    %172 = vector.extract_strided_slice %171 {offsets = [0, 0], sizes = [16, 96], strides = [1, 1]} : vector<16x128xf32> to vector<16x96xf32>
    %173 = arith.negf %172 : vector<16x96xf32>
    %174 = math.exp %173 : vector<16x96xf32>
    %cst_43 = arith.constant 1.000000e+00 : f32
    %175 = vector.broadcast %cst_43 : f32 to vector<16x96xf32>
    %176 = arith.addf %175, %174 : vector<16x96xf32>
    %177 = arith.divf %175, %176 : vector<16x96xf32>
    %178 = vector.extract_strided_slice %177 {offsets = [0, 0], sizes = [16, 32], strides = [1, 1]} : vector<16x96xf32> to vector<16x32xf32>
    %179 = vector.extract_strided_slice %177 {offsets = [0, 32], sizes = [16, 32], strides = [1, 1]} : vector<16x96xf32> to vector<16x32xf32>
    %180 = vector.extract_strided_slice %177 {offsets = [0, 64], sizes = [16, 32], strides = [1, 1]} : vector<16x96xf32> to vector<16x32xf32>
    %181 = vector.extract_strided_slice %171 {offsets = [0, 96], sizes = [16, 32], strides = [1, 1]} : vector<16x128xf32> to vector<16x32xf32>
    %182 = math.tanh %181 : vector<16x32xf32>
    %183 = arith.mulf %179, %141 : vector<16x32xf32>
    %184 = arith.mulf %178, %182 : vector<16x32xf32>
    %185 = arith.addf %183, %184 : vector<16x32xf32>
    %186 = math.tanh %185 : vector<16x32xf32>
    %187 = arith.mulf %180, %186 : vector<16x32xf32>
    %188 = arith.truncf %187 : vector<16x32xf32> to vector<16x32xbf16>
    %c4_i32 = arith.constant 4 : i32
    %189 = arith.index_cast %c4_i32 : i32 to index
    %c0_44 = arith.constant 0 : index
    %c0_45 = arith.constant 0 : index
    %190 = vector.load %arg1[%189, %c0_44, %c0_45] : memref<8x16x128xbf16, #tpu.memory_space<vmem>>, vector<1x16x128xbf16>
    %191 = vector.shape_cast %190 : vector<1x16x128xbf16> to vector<16x128xbf16>
    %192 = arith.extf %191 : vector<16x128xbf16> to vector<16x128xf32>
    %cst_46 = arith.constant dense<0.000000e+00> : vector<16x128xf32>
    %193 = tpu.matmul %167, %3, %cst_46 {dimension_numbers = #tpu.dot_dimension_numbers<[1], [0], [0], [1], [0, 0, 1, 1], [], []>} : vector<16x32xbf16>, vector<32x128xbf16>, vector<16x128xf32> -> vector<16x128xf32>
    %194 = arith.addf %192, %193 : vector<16x128xf32>
    %195 = vector.extract_strided_slice %194 {offsets = [0, 0], sizes = [16, 96], strides = [1, 1]} : vector<16x128xf32> to vector<16x96xf32>
    %196 = arith.negf %195 : vector<16x96xf32>
    %197 = math.exp %196 : vector<16x96xf32>
    %cst_47 = arith.constant 1.000000e+00 : f32
    %198 = vector.broadcast %cst_47 : f32 to vector<16x96xf32>
    %199 = arith.addf %198, %197 : vector<16x96xf32>
    %200 = arith.divf %198, %199 : vector<16x96xf32>
    %201 = vector.extract_strided_slice %200 {offsets = [0, 0], sizes = [16, 32], strides = [1, 1]} : vector<16x96xf32> to vector<16x32xf32>
    %202 = vector.extract_strided_slice %200 {offsets = [0, 32], sizes = [16, 32], strides = [1, 1]} : vector<16x96xf32> to vector<16x32xf32>
    %203 = vector.extract_strided_slice %200 {offsets = [0, 64], sizes = [16, 32], strides = [1, 1]} : vector<16x96xf32> to vector<16x32xf32>
    %204 = vector.extract_strided_slice %194 {offsets = [0, 96], sizes = [16, 32], strides = [1, 1]} : vector<16x128xf32> to vector<16x32xf32>
    %205 = math.tanh %204 : vector<16x32xf32>
    %206 = arith.mulf %202, %164 : vector<16x32xf32>
    %207 = arith.mulf %201, %205 : vector<16x32xf32>
    %208 = arith.addf %206, %207 : vector<16x32xf32>
    %209 = math.tanh %208 : vector<16x32xf32>
    %210 = arith.mulf %203, %209 : vector<16x32xf32>
    %211 = arith.truncf %210 : vector<16x32xf32> to vector<16x32xbf16>
    %cst_48 = arith.constant dense<0.000000e+00> : vector<16x128xf32>
    %212 = tpu.matmul %211, %4, %cst_48 {dimension_numbers = #tpu.dot_dimension_numbers<[1], [0], [0], [1], [0, 0, 1, 1], [], []>} : vector<16x32xbf16>, vector<32x128xbf16>, vector<16x128xf32> -> vector<16x128xf32>
    %cst_49 = arith.constant dense<0.000000e+00> : vector<16x128xf32>
    %213 = tpu.matmul %188, %5, %cst_49 {dimension_numbers = #tpu.dot_dimension_numbers<[1], [0], [0], [1], [0, 0, 1, 1], [], []>} : vector<16x32xbf16>, vector<32x128xbf16>, vector<16x128xf32> -> vector<16x128xf32>
    %214 = arith.addf %212, %213 : vector<16x128xf32>
    %215 = arith.addf %214, %8 : vector<16x128xf32>
    %216 = vector.extract_strided_slice %215 {offsets = [0, 0], sizes = [16, 96], strides = [1, 1]} : vector<16x128xf32> to vector<16x96xf32>
    %217 = arith.negf %216 : vector<16x96xf32>
    %218 = math.exp %217 : vector<16x96xf32>
    %cst_50 = arith.constant 1.000000e+00 : f32
    %219 = vector.broadcast %cst_50 : f32 to vector<16x96xf32>
    %220 = arith.addf %219, %218 : vector<16x96xf32>
    %221 = arith.divf %219, %220 : vector<16x96xf32>
    %222 = vector.extract_strided_slice %221 {offsets = [0, 0], sizes = [16, 32], strides = [1, 1]} : vector<16x96xf32> to vector<16x32xf32>
    %223 = vector.extract_strided_slice %221 {offsets = [0, 32], sizes = [16, 32], strides = [1, 1]} : vector<16x96xf32> to vector<16x32xf32>
    %224 = vector.extract_strided_slice %221 {offsets = [0, 64], sizes = [16, 32], strides = [1, 1]} : vector<16x96xf32> to vector<16x32xf32>
    %225 = vector.extract_strided_slice %215 {offsets = [0, 96], sizes = [16, 32], strides = [1, 1]} : vector<16x128xf32> to vector<16x32xf32>
    %226 = math.tanh %225 : vector<16x32xf32>
    %227 = arith.mulf %223, %185 : vector<16x32xf32>
    %228 = arith.mulf %222, %226 : vector<16x32xf32>
    %229 = arith.addf %227, %228 : vector<16x32xf32>
    %230 = math.tanh %229 : vector<16x32xf32>
    %231 = arith.mulf %224, %230 : vector<16x32xf32>
    %232 = arith.truncf %231 : vector<16x32xf32> to vector<16x32xbf16>
    %c5_i32 = arith.constant 5 : i32
    %233 = arith.index_cast %c5_i32 : i32 to index
    %c0_51 = arith.constant 0 : index
    %c0_52 = arith.constant 0 : index
    %234 = vector.load %arg1[%233, %c0_51, %c0_52] : memref<8x16x128xbf16, #tpu.memory_space<vmem>>, vector<1x16x128xbf16>
    %235 = vector.shape_cast %234 : vector<1x16x128xbf16> to vector<16x128xbf16>
    %236 = arith.extf %235 : vector<16x128xbf16> to vector<16x128xf32>
    %cst_53 = arith.constant dense<0.000000e+00> : vector<16x128xf32>
    %237 = tpu.matmul %211, %3, %cst_53 {dimension_numbers = #tpu.dot_dimension_numbers<[1], [0], [0], [1], [0, 0, 1, 1], [], []>} : vector<16x32xbf16>, vector<32x128xbf16>, vector<16x128xf32> -> vector<16x128xf32>
    %238 = arith.addf %236, %237 : vector<16x128xf32>
    %239 = vector.extract_strided_slice %238 {offsets = [0, 0], sizes = [16, 96], strides = [1, 1]} : vector<16x128xf32> to vector<16x96xf32>
    %240 = arith.negf %239 : vector<16x96xf32>
    %241 = math.exp %240 : vector<16x96xf32>
    %cst_54 = arith.constant 1.000000e+00 : f32
    %242 = vector.broadcast %cst_54 : f32 to vector<16x96xf32>
    %243 = arith.addf %242, %241 : vector<16x96xf32>
    %244 = arith.divf %242, %243 : vector<16x96xf32>
    %245 = vector.extract_strided_slice %244 {offsets = [0, 0], sizes = [16, 32], strides = [1, 1]} : vector<16x96xf32> to vector<16x32xf32>
    %246 = vector.extract_strided_slice %244 {offsets = [0, 32], sizes = [16, 32], strides = [1, 1]} : vector<16x96xf32> to vector<16x32xf32>
    %247 = vector.extract_strided_slice %244 {offsets = [0, 64], sizes = [16, 32], strides = [1, 1]} : vector<16x96xf32> to vector<16x32xf32>
    %248 = vector.extract_strided_slice %238 {offsets = [0, 96], sizes = [16, 32], strides = [1, 1]} : vector<16x128xf32> to vector<16x32xf32>
    %249 = math.tanh %248 : vector<16x32xf32>
    %250 = arith.mulf %246, %208 : vector<16x32xf32>
    %251 = arith.mulf %245, %249 : vector<16x32xf32>
    %252 = arith.addf %250, %251 : vector<16x32xf32>
    %253 = math.tanh %252 : vector<16x32xf32>
    %254 = arith.mulf %247, %253 : vector<16x32xf32>
    %255 = arith.truncf %254 : vector<16x32xf32> to vector<16x32xbf16>
    %cst_55 = arith.constant dense<0.000000e+00> : vector<16x128xf32>
    %256 = tpu.matmul %255, %4, %cst_55 {dimension_numbers = #tpu.dot_dimension_numbers<[1], [0], [0], [1], [0, 0, 1, 1], [], []>} : vector<16x32xbf16>, vector<32x128xbf16>, vector<16x128xf32> -> vector<16x128xf32>
    %cst_56 = arith.constant dense<0.000000e+00> : vector<16x128xf32>
    %257 = tpu.matmul %232, %5, %cst_56 {dimension_numbers = #tpu.dot_dimension_numbers<[1], [0], [0], [1], [0, 0, 1, 1], [], []>} : vector<16x32xbf16>, vector<32x128xbf16>, vector<16x128xf32> -> vector<16x128xf32>
    %258 = arith.addf %256, %257 : vector<16x128xf32>
    %259 = arith.addf %258, %8 : vector<16x128xf32>
    %260 = vector.extract_strided_slice %259 {offsets = [0, 0], sizes = [16, 96], strides = [1, 1]} : vector<16x128xf32> to vector<16x96xf32>
    %261 = arith.negf %260 : vector<16x96xf32>
    %262 = math.exp %261 : vector<16x96xf32>
    %cst_57 = arith.constant 1.000000e+00 : f32
    %263 = vector.broadcast %cst_57 : f32 to vector<16x96xf32>
    %264 = arith.addf %263, %262 : vector<16x96xf32>
    %265 = arith.divf %263, %264 : vector<16x96xf32>
    %266 = vector.extract_strided_slice %265 {offsets = [0, 0], sizes = [16, 32], strides = [1, 1]} : vector<16x96xf32> to vector<16x32xf32>
    %267 = vector.extract_strided_slice %265 {offsets = [0, 32], sizes = [16, 32], strides = [1, 1]} : vector<16x96xf32> to vector<16x32xf32>
    %268 = vector.extract_strided_slice %265 {offsets = [0, 64], sizes = [16, 32], strides = [1, 1]} : vector<16x96xf32> to vector<16x32xf32>
    %269 = vector.extract_strided_slice %259 {offsets = [0, 96], sizes = [16, 32], strides = [1, 1]} : vector<16x128xf32> to vector<16x32xf32>
    %270 = math.tanh %269 : vector<16x32xf32>
    %271 = arith.mulf %267, %229 : vector<16x32xf32>
    %272 = arith.mulf %266, %270 : vector<16x32xf32>
    %273 = arith.addf %271, %272 : vector<16x32xf32>
    %274 = math.tanh %273 : vector<16x32xf32>
    %275 = arith.mulf %268, %274 : vector<16x32xf32>
    %276 = arith.truncf %275 : vector<16x32xf32> to vector<16x32xbf16>
    %c6_i32 = arith.constant 6 : i32
    %277 = arith.index_cast %c6_i32 : i32 to index
    %c0_58 = arith.constant 0 : index
    %c0_59 = arith.constant 0 : index
    %278 = vector.load %arg1[%277, %c0_58, %c0_59] : memref<8x16x128xbf16, #tpu.memory_space<vmem>>, vector<1x16x128xbf16>
    %279 = vector.shape_cast %278 : vector<1x16x128xbf16> to vector<16x128xbf16>
    %280 = arith.extf %279 : vector<16x128xbf16> to vector<16x128xf32>
    %cst_60 = arith.constant dense<0.000000e+00> : vector<16x128xf32>
    %281 = tpu.matmul %255, %3, %cst_60 {dimension_numbers = #tpu.dot_dimension_numbers<[1], [0], [0], [1], [0, 0, 1, 1], [], []>} : vector<16x32xbf16>, vector<32x128xbf16>, vector<16x128xf32> -> vector<16x128xf32>
    %282 = arith.addf %280, %281 : vector<16x128xf32>
    %283 = vector.extract_strided_slice %282 {offsets = [0, 0], sizes = [16, 96], strides = [1, 1]} : vector<16x128xf32> to vector<16x96xf32>
    %284 = arith.negf %283 : vector<16x96xf32>
    %285 = math.exp %284 : vector<16x96xf32>
    %cst_61 = arith.constant 1.000000e+00 : f32
    %286 = vector.broadcast %cst_61 : f32 to vector<16x96xf32>
    %287 = arith.addf %286, %285 : vector<16x96xf32>
    %288 = arith.divf %286, %287 : vector<16x96xf32>
    %289 = vector.extract_strided_slice %288 {offsets = [0, 0], sizes = [16, 32], strides = [1, 1]} : vector<16x96xf32> to vector<16x32xf32>
    %290 = vector.extract_strided_slice %288 {offsets = [0, 32], sizes = [16, 32], strides = [1, 1]} : vector<16x96xf32> to vector<16x32xf32>
    %291 = vector.extract_strided_slice %288 {offsets = [0, 64], sizes = [16, 32], strides = [1, 1]} : vector<16x96xf32> to vector<16x32xf32>
    %292 = vector.extract_strided_slice %282 {offsets = [0, 96], sizes = [16, 32], strides = [1, 1]} : vector<16x128xf32> to vector<16x32xf32>
    %293 = math.tanh %292 : vector<16x32xf32>
    %294 = arith.mulf %290, %252 : vector<16x32xf32>
    %295 = arith.mulf %289, %293 : vector<16x32xf32>
    %296 = arith.addf %294, %295 : vector<16x32xf32>
    %297 = math.tanh %296 : vector<16x32xf32>
    %298 = arith.mulf %291, %297 : vector<16x32xf32>
    %299 = arith.truncf %298 : vector<16x32xf32> to vector<16x32xbf16>
    %cst_62 = arith.constant dense<0.000000e+00> : vector<16x128xf32>
    %300 = tpu.matmul %299, %4, %cst_62 {dimension_numbers = #tpu.dot_dimension_numbers<[1], [0], [0], [1], [0, 0, 1, 1], [], []>} : vector<16x32xbf16>, vector<32x128xbf16>, vector<16x128xf32> -> vector<16x128xf32>
    %cst_63 = arith.constant dense<0.000000e+00> : vector<16x128xf32>
    %301 = tpu.matmul %276, %5, %cst_63 {dimension_numbers = #tpu.dot_dimension_numbers<[1], [0], [0], [1], [0, 0, 1, 1], [], []>} : vector<16x32xbf16>, vector<32x128xbf16>, vector<16x128xf32> -> vector<16x128xf32>
    %302 = arith.addf %300, %301 : vector<16x128xf32>
    %303 = arith.addf %302, %8 : vector<16x128xf32>
    %304 = vector.extract_strided_slice %303 {offsets = [0, 0], sizes = [16, 96], strides = [1, 1]} : vector<16x128xf32> to vector<16x96xf32>
    %305 = arith.negf %304 : vector<16x96xf32>
    %306 = math.exp %305 : vector<16x96xf32>
    %cst_64 = arith.constant 1.000000e+00 : f32
    %307 = vector.broadcast %cst_64 : f32 to vector<16x96xf32>
    %308 = arith.addf %307, %306 : vector<16x96xf32>
    %309 = arith.divf %307, %308 : vector<16x96xf32>
    %310 = vector.extract_strided_slice %309 {offsets = [0, 0], sizes = [16, 32], strides = [1, 1]} : vector<16x96xf32> to vector<16x32xf32>
    %311 = vector.extract_strided_slice %309 {offsets = [0, 32], sizes = [16, 32], strides = [1, 1]} : vector<16x96xf32> to vector<16x32xf32>
    %312 = vector.extract_strided_slice %309 {offsets = [0, 64], sizes = [16, 32], strides = [1, 1]} : vector<16x96xf32> to vector<16x32xf32>
    %313 = vector.extract_strided_slice %303 {offsets = [0, 96], sizes = [16, 32], strides = [1, 1]} : vector<16x128xf32> to vector<16x32xf32>
    %314 = math.tanh %313 : vector<16x32xf32>
    %315 = arith.mulf %311, %273 : vector<16x32xf32>
    %316 = arith.mulf %310, %314 : vector<16x32xf32>
    %317 = arith.addf %315, %316 : vector<16x32xf32>
    %318 = math.tanh %317 : vector<16x32xf32>
    %319 = arith.mulf %312, %318 : vector<16x32xf32>
    %320 = arith.truncf %319 : vector<16x32xf32> to vector<16x32xbf16>
    %c7_i32 = arith.constant 7 : i32
    %321 = arith.index_cast %c7_i32 : i32 to index
    %c0_65 = arith.constant 0 : index
    %c0_66 = arith.constant 0 : index
    %322 = vector.load %arg1[%321, %c0_65, %c0_66] : memref<8x16x128xbf16, #tpu.memory_space<vmem>>, vector<1x16x128xbf16>
    %323 = vector.shape_cast %322 : vector<1x16x128xbf16> to vector<16x128xbf16>
    %324 = arith.extf %323 : vector<16x128xbf16> to vector<16x128xf32>
    %cst_67 = arith.constant dense<0.000000e+00> : vector<16x128xf32>
    %325 = tpu.matmul %299, %3, %cst_67 {dimension_numbers = #tpu.dot_dimension_numbers<[1], [0], [0], [1], [0, 0, 1, 1], [], []>} : vector<16x32xbf16>, vector<32x128xbf16>, vector<16x128xf32> -> vector<16x128xf32>
    %326 = arith.addf %324, %325 : vector<16x128xf32>
    %327 = vector.extract_strided_slice %326 {offsets = [0, 0], sizes = [16, 96], strides = [1, 1]} : vector<16x128xf32> to vector<16x96xf32>
    %328 = arith.negf %327 : vector<16x96xf32>
    %329 = math.exp %328 : vector<16x96xf32>
    %cst_68 = arith.constant 1.000000e+00 : f32
    %330 = vector.broadcast %cst_68 : f32 to vector<16x96xf32>
    %331 = arith.addf %330, %329 : vector<16x96xf32>
    %332 = arith.divf %330, %331 : vector<16x96xf32>
    %333 = vector.extract_strided_slice %332 {offsets = [0, 0], sizes = [16, 32], strides = [1, 1]} : vector<16x96xf32> to vector<16x32xf32>
    %334 = vector.extract_strided_slice %332 {offsets = [0, 32], sizes = [16, 32], strides = [1, 1]} : vector<16x96xf32> to vector<16x32xf32>
    %335 = vector.extract_strided_slice %332 {offsets = [0, 64], sizes = [16, 32], strides = [1, 1]} : vector<16x96xf32> to vector<16x32xf32>
    %336 = vector.extract_strided_slice %326 {offsets = [0, 96], sizes = [16, 32], strides = [1, 1]} : vector<16x128xf32> to vector<16x32xf32>
    %337 = math.tanh %336 : vector<16x32xf32>
    %338 = arith.mulf %334, %296 : vector<16x32xf32>
    %339 = arith.mulf %333, %337 : vector<16x32xf32>
    %340 = arith.addf %338, %339 : vector<16x32xf32>
    %341 = math.tanh %340 : vector<16x32xf32>
    %342 = arith.mulf %335, %341 : vector<16x32xf32>
    %343 = arith.truncf %342 : vector<16x32xf32> to vector<16x32xbf16>
    %cst_69 = arith.constant dense<0.000000e+00> : vector<16x128xf32>
    %344 = tpu.matmul %343, %4, %cst_69 {dimension_numbers = #tpu.dot_dimension_numbers<[1], [0], [0], [1], [0, 0, 1, 1], [], []>} : vector<16x32xbf16>, vector<32x128xbf16>, vector<16x128xf32> -> vector<16x128xf32>
    %cst_70 = arith.constant dense<0.000000e+00> : vector<16x128xf32>
    %345 = tpu.matmul %320, %5, %cst_70 {dimension_numbers = #tpu.dot_dimension_numbers<[1], [0], [0], [1], [0, 0, 1, 1], [], []>} : vector<16x32xbf16>, vector<32x128xbf16>, vector<16x128xf32> -> vector<16x128xf32>
    %346 = arith.addf %344, %345 : vector<16x128xf32>
    %347 = arith.addf %346, %8 : vector<16x128xf32>
    %348 = vector.extract_strided_slice %347 {offsets = [0, 0], sizes = [16, 96], strides = [1, 1]} : vector<16x128xf32> to vector<16x96xf32>
    %349 = arith.negf %348 : vector<16x96xf32>
    %350 = math.exp %349 : vector<16x96xf32>
    %cst_71 = arith.constant 1.000000e+00 : f32
    %351 = vector.broadcast %cst_71 : f32 to vector<16x96xf32>
    %352 = arith.addf %351, %350 : vector<16x96xf32>
    %353 = arith.divf %351, %352 : vector<16x96xf32>
    %354 = vector.extract_strided_slice %353 {offsets = [0, 0], sizes = [16, 32], strides = [1, 1]} : vector<16x96xf32> to vector<16x32xf32>
    %355 = vector.extract_strided_slice %353 {offsets = [0, 32], sizes = [16, 32], strides = [1, 1]} : vector<16x96xf32> to vector<16x32xf32>
    %356 = vector.extract_strided_slice %353 {offsets = [0, 64], sizes = [16, 32], strides = [1, 1]} : vector<16x96xf32> to vector<16x32xf32>
    %357 = vector.extract_strided_slice %347 {offsets = [0, 96], sizes = [16, 32], strides = [1, 1]} : vector<16x128xf32> to vector<16x32xf32>
    %358 = math.tanh %357 : vector<16x32xf32>
    %359 = arith.mulf %355, %317 : vector<16x32xf32>
    %360 = arith.mulf %354, %358 : vector<16x32xf32>
    %361 = arith.addf %359, %360 : vector<16x32xf32>
    %362 = math.tanh %361 : vector<16x32xf32>
    %363 = arith.mulf %356, %362 : vector<16x32xf32>
    %364 = arith.truncf %363 : vector<16x32xf32> to vector<16x32xbf16>
    %c8_i32 = arith.constant 8 : i32
    %c0_72 = arith.constant 0 : index
    %c0_73 = arith.constant 0 : index
    %365 = vector.load %arg9[%c0_72, %c0_73] : memref<16x32xbf16, #tpu.memory_space<vmem>>, vector<16x32xbf16>
    tpu.vector_store %arg9[%c0_72, %c0_73], %343 {strides = array<i32>} : memref<16x32xbf16, #tpu.memory_space<vmem>>, vector<16x32xbf16>,
    %c0_74 = arith.constant 0 : index
    %c0_75 = arith.constant 0 : index
    %366 = vector.load %arg10[%c0_74, %c0_75] : memref<16x32xf32, #tpu.memory_space<vmem>>, vector<16x32xf32>
    tpu.vector_store %arg10[%c0_74, %c0_75], %340 {strides = array<i32>} : memref<16x32xf32, #tpu.memory_space<vmem>>, vector<16x32xf32>,
    %c0_76 = arith.constant 0 : index
    %c0_77 = arith.constant 0 : index
    %367 = vector.load %arg11[%c0_76, %c0_77] : memref<16x32xbf16, #tpu.memory_space<vmem>>, vector<16x32xbf16>
    tpu.vector_store %arg11[%c0_76, %c0_77], %364 {strides = array<i32>} : memref<16x32xbf16, #tpu.memory_space<vmem>>, vector<16x32xbf16>,
    %c0_78 = arith.constant 0 : index
    %c0_79 = arith.constant 0 : index
    %368 = vector.load %arg12[%c0_78, %c0_79] : memref<16x32xf32, #tpu.memory_space<vmem>>, vector<16x32xf32>
    tpu.vector_store %arg12[%c0_78, %c0_79], %361 {strides = array<i32>} : memref<16x32xf32, #tpu.memory_space<vmem>>, vector<16x32xf32>,
    %c0_i32_80 = arith.constant 0 : i32
    %369 = arith.cmpi eq, %arg0, %c0_i32_80 : i32
    %370 = arith.extui %369 : i1 to i32
    %c0_i32_81 = arith.constant 0 : i32
    %371 = arith.cmpi ne, %370, %c0_i32_81 : i32
    scf.if %371 {
      %372 = arith.extf %364 : vector<16x32xbf16> to vector<16x32xf32>
      %c0_82 = arith.constant 0 : index
      %c0_83 = arith.constant 0 : index
      %373 = vector.load %arg6[%c0_82, %c0_83] : memref<32x1xf32, #tpu.memory_space<vmem>>, vector<32x1xf32>
      %cst_84 = arith.constant dense<0.000000e+00> : vector<16x1xf32>
      %374 = tpu.matmul %372, %373, %cst_84 {dimension_numbers = #tpu.dot_dimension_numbers<[1], [0], [0], [1], [0, 0, 1, 1], [], []>} : vector<16x32xf32>, vector<32x1xf32>, vector<16x1xf32> -> vector<16x1xf32>
      %c0_85 = arith.constant 0 : index
      %c0_86 = arith.constant 0 : index
      %375 = vector.load %arg7[%c0_85, %c0_86] : memref<1x1xf32, #tpu.memory_space<vmem>>, vector<1x1xf32>
      %376 = vector.broadcast %375 : vector<1x1xf32> to vector<16x1xf32>
      %377 = arith.addf %374, %376 : vector<16x1xf32>
      %c0_87 = arith.constant 0 : index
      %c0_88 = arith.constant 0 : index
      %378 = vector.load %arg8[%c0_87, %c0_88] : memref<16x1xf32, #tpu.memory_space<vmem>>, vector<16x1xf32>
      tpu.vector_store %arg8[%c0_87, %c0_88], %377 {strides = array<i32>} : memref<16x1xf32, #tpu.memory_space<vmem>>, vector<16x1xf32>,
    } else {
    }
    return
  }
  func.func @transform_0(%arg0: i32) -> (i32, i32, i32) {
    %c0_i32 = arith.constant 0 : i32
    %c0_i32_0 = arith.constant 0 : i32
    %c0_i32_1 = arith.constant 0 : i32
    return %arg0, %c0_i32, %c0_i32_0 : i32, i32, i32
  }
  func.func @transform_1(%arg0: i32) -> (i32, i32) {
    %c0_i32 = arith.constant 0 : i32
    %c0_i32_0 = arith.constant 0 : i32
    %c0_i32_1 = arith.constant 0 : i32
    return %c0_i32, %c0_i32_0 : i32, i32
  }
  func.func @transform_2(%arg0: i32) -> (i32, i32) {
    %c0_i32 = arith.constant 0 : i32
    %c0_i32_0 = arith.constant 0 : i32
    %c0_i32_1 = arith.constant 0 : i32
    return %c0_i32, %c0_i32_0 : i32, i32
  }
  func.func @transform_3(%arg0: i32) -> (i32, i32) {
    %c0_i32 = arith.constant 0 : i32
    %c0_i32_0 = arith.constant 0 : i32
    %c0_i32_1 = arith.constant 0 : i32
    return %c0_i32, %c0_i32_0 : i32, i32
  }
  func.func @transform_4(%arg0: i32) -> (i32, i32) {
    %c0_i32 = arith.constant 0 : i32
    %c0_i32_0 = arith.constant 0 : i32
    %c0_i32_1 = arith.constant 0 : i32
    return %c0_i32, %c0_i32_0 : i32, i32
  }
  func.func @transform_5(%arg0: i32) -> (i32, i32) {
    %c0_i32 = arith.constant 0 : i32
    %c0_i32_0 = arith.constant 0 : i32
    %c0_i32_1 = arith.constant 0 : i32
    return %c0_i32, %c0_i32_0 : i32, i32
  }
  func.func @transform_6(%arg0: i32) -> (i32, i32) {
    %c0_i32 = arith.constant 0 : i32
    %c0_i32_0 = arith.constant 0 : i32
    %c0_i32_1 = arith.constant 0 : i32
    return %c0_i32, %c0_i32_0 : i32, i32
  }
  func.func @transform_7(%arg0: i32) -> (i32, i32) {
    %c0_i32 = arith.constant 0 : i32
    %c0_i32_0 = arith.constant 0 : i32
    %c0_i32_1 = arith.constant 0 : i32
    return %c0_i32, %c0_i32_0 : i32, i32
  }
}

</mosaic_0001>

<llo_original>
// kernel: tpu_custom_call.1
$region0: #{tpu_custom_call.1}
  #allocation0 [shape = 'u32[]', space=smem, size = 0x4, offset = 0x4, fixed_abs, tag = 'smem constant byte address 0x4 - core index']
  #allocation1 [shape = 'u32[72,128]{1,0:T(1,128)}', space=vmem, size = 0x9000, scoped, tag = 'internal scratch']
  #allocation2 [shape = 'bf16[16,32]{1,0:T(8,128)(2,1)}', space=vmem, size = 0x1000, scoped, tag = 'scratch operand']
  #allocation3 [shape = 'f32[16,32]{1,0:T(8,128)}', space=vmem, size = 0x2000, scoped, tag = 'scratch operand']
  #allocation4 [shape = 'bf16[16,32]{1,0:T(8,128)(2,1)}', space=vmem, size = 0x1000, scoped, tag = 'scratch operand']
  #allocation5 [shape = 'f32[16,32]{1,0:T(8,128)}', space=vmem, size = 0x2000, scoped, tag = 'scratch operand']
  #allocation6 [shape = 'f32[1,1]{1,0:T(1,128)S(1)}', space=vmem, size = 0x200, scoped, tag = 'scoped memory for tpu_custom_call.1']
  %s0 = inlined_call_operand.hbm [shape: bf16[8,16,128], index: 0, kind: input, shape index: {}]
  %s1 = inlined_call_operand.vmem [shape: bf16[32,128], index: 1, kind: input, shape index: {}]
  %s2 = inlined_call_operand.vmem [shape: bf16[32,128], index: 2, kind: input, shape index: {}]
  %s3 = inlined_call_operand.hbm [shape: bf16[32,128], index: 3, kind: input, shape index: {}]
  %s4 = inlined_call_operand.vmem [shape: f32[1,128], index: 4, kind: input, shape index: {}]
  %s5 = inlined_call_operand.vmem [shape: f32[32,1], index: 5, kind: input, shape index: {}]
  %s6 = inlined_call_operand.<no memory space> [shape: f32[1,1], index: 6, kind: input, shape index: {}]
  %s7 = inlined_call_operand.vmem [shape: f32[16,1], index: 7, kind: output, shape index: {}]
  %s8 = sld [smem:[#allocation0]]
  $region54: #{tpu_custom_call.1} parent=0
    _
  %s10 = ssub.s32 1, %s8
  %s11 = scalar_select 0, %s10, %s8
  %v12 = vstv %s6
  %13 = vst [vmem:[#allocation6] sm:$0x1] %v12
  $region1: #{tpu_custom_call.1} parent=0
    #allocation7 [shape = 'u8[32768]{0}', space=vmem, size = 0x8000, scoped, tag = 'input window, operand 0, single buffered']
    #allocation8 [shape = 's32[1]{0}', space=sflag, size = 0x4, scoped, tag = 'scoped memory for tpu_custom_call.1']
    #allocation9 [shape = 'u8[8192]{0}', space=vmem, size = 0x2000, scoped, tag = 'input window, operand 3, single buffered']
    #allocation10 [shape = 's32[1]{0}', space=sflag, size = 0x4, scoped, tag = 'scoped memory for tpu_custom_call.1']
    %14 = vsyncpa [#allocation8], 0
    %15 = vsyncpa [#allocation10], 0
    // Predicated region
    $region2: #{tpu_custom_call.1} parent=1 // pred_check
      _
    $region3: #{tpu_custom_call.1} parent=1 // pred_check_branch
      %17 = sbr.rel (0) target = $region5
    $region4: #{tpu_custom_call.1} parent=1 // pred_region
      %19 = vsyncadd [#allocation8], 0
      %s20 = sshll.u32 %s0, 4
      %s21 = int_to_ptr.hbm [resolvable:$true] %s20
      %s22 = sshll.u32 [#allocation7], 4
      %s23 = int_to_ptr.vmem [resolvable:$true] %s22
      %28 = dma.hbm_to_vmem [thread:$0]  %s21, 1024, %s23, [#allocation8], 64, 64, 4
    $region5: #{tpu_custom_call.1} parent=1 // pred_fallthru
      _
    // Predicated region
    $region6: #{tpu_custom_call.1} parent=1 // pred_check
      _
    $region7: #{tpu_custom_call.1} parent=1 // pred_check_branch
      %30 = sbr.rel (0) target = $region9
    $region8: #{tpu_custom_call.1} parent=1 // pred_region
      _
    $region9: #{tpu_custom_call.1} parent=1 // pred_fallthru
      _
    // Predicated region
    $region10: #{tpu_custom_call.1} parent=1 // pred_check
      _
    $region11: #{tpu_custom_call.1} parent=1 // pred_check_branch
      %32 = sbr.rel (0) target = $region13
    $region12: #{tpu_custom_call.1} parent=1 // pred_region
      _
    $region13: #{tpu_custom_call.1} parent=1 // pred_fallthru
      _
    // Predicated region
    $region14: #{tpu_custom_call.1} parent=1 // pred_check
      _
    $region15: #{tpu_custom_call.1} parent=1 // pred_check_branch
      %34 = sbr.rel (0) target = $region17
    $region16: #{tpu_custom_call.1} parent=1 // pred_region
      %36 = vsyncadd [#allocation10], 0
      %s37 = sshll.u32 %s3, 4
      %s38 = int_to_ptr.hbm [resolvable:$true] %s37
      %s39 = sshll.u32 [#allocation9], 4
      %s40 = int_to_ptr.vmem [resolvable:$true] %s39
      %45 = dma.hbm_to_vmem [thread:$0]  %s38, 256, %s40, [#allocation10], 64, 64, 4
    $region17: #{tpu_custom_call.1} parent=1 // pred_fallthru
      _
    // Predicated region
    $region18: #{tpu_custom_call.1} parent=1 // pred_check
      _
    $region19: #{tpu_custom_call.1} parent=1 // pred_check_branch
      %47 = sbr.rel (0) target = $region21
    $region20: #{tpu_custom_call.1} parent=1 // pred_region
      _
    $region21: #{tpu_custom_call.1} parent=1 // pred_fallthru
      _
    // Predicated region
    $region22: #{tpu_custom_call.1} parent=1 // pred_check
      _
    $region23: #{tpu_custom_call.1} parent=1 // pred_check_branch
      %49 = sbr.rel (0) target = $region25
    $region24: #{tpu_custom_call.1} parent=1 // pred_region
      _
    $region25: #{tpu_custom_call.1} parent=1 // pred_fallthru
      _
    // Predicated region
    $region26: #{tpu_custom_call.1} parent=1 // pred_check
      _
    $region27: #{tpu_custom_call.1} parent=1 // pred_check_branch
      %51 = sbr.rel (0) target = $region29
    $region28: #{tpu_custom_call.1} parent=1 // pred_region
      _
    $region29: #{tpu_custom_call.1} parent=1 // pred_fallthru
      _
    // Predicated region
    $region30: #{tpu_custom_call.1} parent=1 // pred_check
      _
    $region31: #{tpu_custom_call.1} parent=1 // pred_check_branch
      %53 = sbr.rel (0) target = $region33
    $region32: #{tpu_custom_call.1} parent=1 // pred_region
      %55 = dma.done [#allocation8], 1024
    $region33: #{tpu_custom_call.1} parent=1 // pred_fallthru
      _
    // Predicated region
    $region34: #{tpu_custom_call.1} parent=1 // pred_check
      _
    $region35: #{tpu_custom_call.1} parent=1 // pred_check_branch
      %57 = sbr.rel (0) target = $region37
    $region36: #{tpu_custom_call.1} parent=1 // pred_region
      %59 = dma.done [#allocation10], 256
    $region37: #{tpu_custom_call.1} parent=1 // pred_fallthru
      _
    %p61 = scmp.eq.s32.totalorder 0, 0
    // Predicated region
    $region38: #{tpu_custom_call.1} parent=1 // pred_check
      %p62 = pneg %p61
    $region39: #{tpu_custom_call.1} parent=1 // pred_check_branch
      %64 = sbr.rel (%p62) target = $region41
    $region40: #{tpu_custom_call.1} parent=1 // pred_region
      %vm65 = vcmask 257024
      %66 = vst.msk [vmem:[#allocation2] sm:$0xf] %vm65, 0
      %67 = vst.msk [vmem:[#allocation2 + $0x4] sm:$0xf] %vm65, 0
      %vm68 = vcmask 261120
      %69 = vst.msk [vmem:[#allocation3] sm:$0xff] %vm68, 0.0
      %70 = vst.msk [vmem:[#allocation3 + $0x8] sm:$0xff] %vm68, 0.0
      %71 = vst.msk [vmem:[#allocation4] sm:$0xf] %vm65, 0
      %72 = vst.msk [vmem:[#allocation4 + $0x4] sm:$0xf] %vm65, 0
      %73 = vst.msk [vmem:[#allocation5] sm:$0xff] %vm68, 0.0
      %74 = vst.msk [vmem:[#allocation5 + $0x8] sm:$0xff] %vm68, 0.0
    $region41: #{tpu_custom_call.1} parent=1 // pred_fallthru
      _
    %v75 = vld [vmem:[%s1] sm:$0xf]
    %v76 = vld [vmem:[%s1 + $0x4] sm:$0xf]
    %v77 = vld [vmem:[%s1 + $0x8] sm:$0xf]
    %v78 = vld [vmem:[%s1 + $0xc] sm:$0xf]
    %v79 = vld [vmem:[%s2] sm:$0xf]
    %v80 = vld [vmem:[%s2 + $0x4] sm:$0xf]
    %v81 = vld [vmem:[%s2 + $0x8] sm:$0xf]
    %v82 = vld [vmem:[%s2 + $0xc] sm:$0xf]
    %v83 = vld [vmem:[#allocation9] sm:$0xf]
    %v84 = vld [vmem:[#allocation9 + $0x4] sm:$0xf]
    %v85 = vld [vmem:[#allocation9 + $0x8] sm:$0xf]
    %v86 = vld [vmem:[#allocation9 + $0xc] sm:$0xf]
    %v87 = vld [vmem:[%s4] sm:$0x1]
    %v89 = vperm.slane %v87, 0
    %v91 = vld [vmem:[#allocation2] sm:$0xf]
    %v92 = vld [vmem:[#allocation2 + $0x4] sm:$0xf]
    %v93 = vld [vmem:[#allocation3] sm:$0xff]
    %v94 = vld [vmem:[#allocation3 + $0x8] sm:$0xff]
    %v95 = vld [vmem:[#allocation4] sm:$0xf]
    %v96 = vld [vmem:[#allocation4 + $0x4] sm:$0xf]
    %v97 = vld [vmem:[#allocation5] sm:$0xff]
    %v98 = vld [vmem:[#allocation5 + $0x8] sm:$0xff]
    %v99 = vld [vmem:[#allocation7] sm:$0xf]
    %v100 = vld [vmem:[#allocation7 + $0x4] sm:$0xf]
    %v101 = vunpack.c.l.bf16 %v99
    %v102 = vunpack.c.l.bf16 %v100
    %v105 = vunpack.c.l.b16 %v91
    %v106 = vunpack.c.l.b16 %v92
    %v107 = vpack.c.b16 %v106, %v105
    %v112 = vunpack.c.l.b16 %v75
    %v113 = vunpack.c.l.b16 %v76
    %v114 = vunpack.c.l.b16 %v77
    %v115 = vunpack.c.l.b16 %v78
    %v116 = vpack.c.b16 %v113, %v112
    %v117 = vpack.c.b16 %v115, %v114
    %vm120 = vcmask 261120
    %v122 = vsel %vm120, %v107, 0
    %124 = vmatpush.bf16.msra.mxu0 0
    %125 = vmatpush.bf16.msra.mxu0 0
    %126 = vmatpush.bf16.msra.mxu0 0
    %127 = vmatpush.bf16.msra.mxu0 0
    %128 = vmatpush.bf16.msra.mxu0 0
    %129 = vmatpush.bf16.msra.mxu0 0
    %130 = vmatpush.bf16.msra.mxu0 %v117
    %131 = vmatpush.bf16.msra.mxu0 %v116
    %132 = vmatmul.bf16.gmra.mxu0 %v122
    %v133 = vpop.f32.mrf.mxu0
    %v134 = vadd.f32 0.0, %v133
    %v135 = vpop.f32.mrf.mxu0
    %v136 = vadd.f32 0.0, %v135
    %137 = vdwg.mxu0
    %v138 = vadd.f32 %v101, %v134
    %v139 = vadd.f32 %v102, %v136
    %v140 = vxor.u32 %v138, 2147483648
    %v141 = vxor.u32 %v139, 2147483648
    %v142 = vmul.f32 %v140, 1.442695
    %v143 = vpow.pop %v142
    %v144 = vmul.f32 %v141, 1.442695
    %v145 = vpow.pop %v144
    %v146 = vadd.f32 %v143, 1.0
    %v147 = vadd.f32 %v145, 1.0
    %v148 = vrcp.pop %v146
    %v149 = vmul.f32 %v146, %v148
    %v150 = vsub.f32 1.0, %v149
    %v151 = vmul.f32 %v148, %v150
    %v152 = vadd.f32 %v148, %v151
    %vm153 = vweird.f32 %v146
    %vm154 = vweird.f32 %v148
    %vm155 = vmor %vm153, %vm154
    %v156 = vsel %vm155, %v148, %v152
    %v157 = vand.u32 2147483647, %v146
    %vm158 = vcmp.eq.f32.partialorder %v157, 8.507059e+37
    %v159 = vand.u32 %v146, 2147483648
    %v160 = vor.u32 1.1754944e-38, %v159
    %v161 = vsel %vm158, %v160, %v156
    %v162 = vmul.f32 1.0, %v161
    %v163 = vrcp.pop %v147
    %v164 = vmul.f32 %v147, %v163
    %v165 = vsub.f32 1.0, %v164
    %v166 = vmul.f32 %v163, %v165
    %v167 = vadd.f32 %v163, %v166
    %vm168 = vweird.f32 %v147
    %vm169 = vweird.f32 %v163
    %vm170 = vmor %vm168, %vm169
    %v171 = vsel %vm170, %v163, %v167
    %v172 = vand.u32 2147483647, %v147
    %vm173 = vcmp.eq.f32.partialorder %v172, 8.507059e+37
    %v174 = vand.u32 %v147, 2147483648
    %v175 = vor.u32 1.1754944e-38, %v174
    %v176 = vsel %vm173, %v175, %v171
    %v177 = vmul.f32 1.0, %v176
    %v178 = vtanh.pop %v138
    %v179 = vtanh.pop %v139
    %182 = vrot.lane.b32.xlu0 %v93, 32
    %v183 = vpop.permute.xlu0 %182
    %184 = vrot.lane.b32.xlu0 %v94, 32
    %v185 = vpop.permute.xlu0 %184
    %v188 = vmul.f32 %v162, %v183
    %v189 = vmul.f32 %v177, %v185
    %192 = vrot.lane.b32.xlu0 %v178, 32
    %v193 = vpop.permute.xlu0 %192
    %194 = vrot.lane.b32.xlu0 %v179, 32
    %v195 = vpop.permute.xlu0 %194
    %v198 = vmul.f32 %v162, %v193
    %v199 = vmul.f32 %v177, %v195
    %202 = vrot.lane.b32.xlu0 %v198, 32
    %v203 = vpop.permute.xlu0 %202
    %204 = vrot.lane.b32.xlu0 %v199, 32
    %v205 = vpop.permute.xlu0 %204
    %v208 = vadd.f32 %v188, %v203
    %v209 = vadd.f32 %v189, %v205
    %v210 = vtanh.pop %v208
    %v211 = vtanh.pop %v209
    %214 = vrot.lane.b32.xlu0 %v210, 32
    %v215 = vpop.permute.xlu0 %214
    %216 = vrot.lane.b32.xlu0 %v211, 32
    %v217 = vpop.permute.xlu0 %216
    %v220 = vmul.f32 %v162, %v215
    %v221 = vmul.f32 %v177, %v217
    %v222 = vpack.c.bf16 %v221, %v220
    %v225 = vunpack.c.l.b16 %v95
    %v226 = vunpack.c.l.b16 %v96
    %v227 = vpack.c.b16 %v226, %v225
    %v232 = vunpack.c.l.b16 %v83
    %v233 = vunpack.c.l.b16 %v84
    %v234 = vunpack.c.l.b16 %v85
    %v235 = vunpack.c.l.b16 %v86
    %v236 = vpack.c.b16 %v233, %v232
    %v237 = vpack.c.b16 %v235, %v234
    %v241 = vsel %vm120, %v227, 0
    %243 = vmatpush.bf16.msra.mxu0 0
    %244 = vmatpush.bf16.msra.mxu0 0
    %245 = vmatpush.bf16.msra.mxu0 0
    %246 = vmatpush.bf16.msra.mxu0 0
    %247 = vmatpush.bf16.msra.mxu0 0
    %248 = vmatpush.bf16.msra.mxu0 0
    %249 = vmatpush.bf16.msra.mxu0 %v237
    %250 = vmatpush.bf16.msra.mxu0 %v236
    %251 = vmatmul.bf16.gmra.mxu0 %v241
    %v252 = vpop.f32.mrf.mxu0
    %v253 = vadd.f32 0.0, %v252
    %v254 = vpop.f32.mrf.mxu0
    %v255 = vadd.f32 0.0, %v254
    %256 = vdwg.mxu0
    %258 = vrot.lane.b32.xlu0 %v222, 64
    %v259 = vpop.permute.xlu0 %258
    %v264 = vunpack.c.l.b16 %v79
    %v265 = vunpack.c.l.b16 %v80
    %v266 = vunpack.c.l.b16 %v81
    %v267 = vunpack.c.l.b16 %v82
    %v268 = vpack.c.b16 %v265, %v264
    %v269 = vpack.c.b16 %v267, %v266
    %v273 = vsel %vm120, %v259, 0
    %275 = vmatpush.bf16.msra.mxu0 0
    %276 = vmatpush.bf16.msra.mxu0 0
    %277 = vmatpush.bf16.msra.mxu0 0
    %278 = vmatpush.bf16.msra.mxu0 0
    %279 = vmatpush.bf16.msra.mxu0 0
    %280 = vmatpush.bf16.msra.mxu0 0
    %281 = vmatpush.bf16.msra.mxu0 %v269
    %282 = vmatpush.bf16.msra.mxu0 %v268
    %283 = vmatmul.bf16.gmra.mxu0 %v273
    %v284 = vpop.f32.mrf.mxu0
    %v285 = vadd.f32 %v253, %v284
    %v286 = vpop.f32.mrf.mxu0
    %v287 = vadd.f32 %v255, %v286
    %288 = vdwg.mxu0
    %v289 = vadd.f32 %v285, %v89
    %v290 = vadd.f32 %v287, %v89
    %v291 = vxor.u32 %v289, 2147483648
    %v292 = vxor.u32 %v290, 2147483648
    %v293 = vmul.f32 %v291, 1.442695
    %v294 = vpow.pop %v293
    %v295 = vmul.f32 %v292, 1.442695
    %v296 = vpow.pop %v295
    %v297 = vadd.f32 %v294, 1.0
    %v298 = vadd.f32 %v296, 1.0
    %v299 = vrcp.pop %v297
    %v300 = vmul.f32 %v297, %v299
    %v301 = vsub.f32 1.0, %v300
    %v302 = vmul.f32 %v299, %v301
    %v303 = vadd.f32 %v299, %v302
    %vm304 = vweird.f32 %v297
    %vm305 = vweird.f32 %v299
    %vm306 = vmor %vm304, %vm305
    %v307 = vsel %vm306, %v299, %v303
    %v308 = vand.u32 2147483647, %v297
    %vm309 = vcmp.eq.f32.partialorder %v308, 8.507059e+37
    %v310 = vand.u32 %v297, 2147483648
    %v311 = vor.u32 1.1754944e-38, %v310
    %v312 = vsel %vm309, %v311, %v307
    %v313 = vmul.f32 1.0, %v312
    %v314 = vrcp.pop %v298
    %v315 = vmul.f32 %v298, %v314
    %v316 = vsub.f32 1.0, %v315
    %v317 = vmul.f32 %v314, %v316
    %v318 = vadd.f32 %v314, %v317
    %vm319 = vweird.f32 %v298
    %vm320 = vweird.f32 %v314
    %vm321 = vmor %vm319, %vm320
    %v322 = vsel %vm321, %v314, %v318
    %v323 = vand.u32 2147483647, %v298
    %vm324 = vcmp.eq.f32.partialorder %v323, 8.507059e+37
    %v325 = vand.u32 %v298, 2147483648
    %v326 = vor.u32 1.1754944e-38, %v325
    %v327 = vsel %vm324, %v326, %v322
    %v328 = vmul.f32 1.0, %v327
    %v329 = vtanh.pop %v289
    %v330 = vtanh.pop %v290
    %333 = vrot.lane.b32.xlu0 %v97, 32
    %v334 = vpop.permute.xlu0 %333
    %335 = vrot.lane.b32.xlu0 %v98, 32
    %v336 = vpop.permute.xlu0 %335
    %v339 = vmul.f32 %v313, %v334
    %v340 = vmul.f32 %v328, %v336
    %343 = vrot.lane.b32.xlu0 %v329, 32
    %v344 = vpop.permute.xlu0 %343
    %345 = vrot.lane.b32.xlu0 %v330, 32
    %v346 = vpop.permute.xlu0 %345
    %v349 = vmul.f32 %v313, %v344
    %v350 = vmul.f32 %v328, %v346
    %353 = vrot.lane.b32.xlu0 %v349, 32
    %v354 = vpop.permute.xlu0 %353
    %355 = vrot.lane.b32.xlu0 %v350, 32
    %v356 = vpop.permute.xlu0 %355
    %v359 = vadd.f32 %v339, %v354
    %v360 = vadd.f32 %v340, %v356
    %v361 = vtanh.pop %v359
    %v362 = vtanh.pop %v360
    %365 = vrot.lane.b32.xlu0 %v361, 32
    %v366 = vpop.permute.xlu0 %365
    %367 = vrot.lane.b32.xlu0 %v362, 32
    %v368 = vpop.permute.xlu0 %367
    %v371 = vmul.f32 %v313, %v366
    %v372 = vmul.f32 %v328, %v368
    %v373 = vpack.c.bf16 %v372, %v371
    %s374 = scalar_lea.vmem [#allocation7], 8
    %v375 = vld [vmem:[%s374] sm:$0xf]
    %v376 = vld [vmem:[%s374 + $0x4] sm:$0xf]
    %v377 = vunpack.c.l.bf16 %v375
    %v378 = vunpack.c.l.bf16 %v376
    %379 = vmatpush.bf16.msra.mxu0 0
    %380 = vmatpush.bf16.msra.mxu0 0
    %381 = vmatpush.bf16.msra.mxu0 0
    %382 = vmatpush.bf16.msra.mxu0 0
    %383 = vmatpush.bf16.msra.mxu0 0
    %384 = vmatpush.bf16.msra.mxu0 0
    %385 = vmatpush.bf16.msra.mxu0 %v117
    %386 = vmatpush.bf16.msra.mxu0 %v116
    %387 = vmatmul.bf16.gmra.mxu0 %v273
    %v388 = vpop.f32.mrf.mxu0
    %v389 = vadd.f32 0.0, %v388
    %v390 = vpop.f32.mrf.mxu0
    %v391 = vadd.f32 0.0, %v390
    %392 = vdwg.mxu0
    %v393 = vadd.f32 %v377, %v389
    %v394 = vadd.f32 %v378, %v391
    %v395 = vxor.u32 %v393, 2147483648
    %v396 = vxor.u32 %v394, 2147483648
    %v397 = vmul.f32 %v395, 1.442695
    %v398 = vpow.pop %v397
    %v399 = vmul.f32 %v396, 1.442695
    %v400 = vpow.pop %v399
    %v401 = vadd.f32 %v398, 1.0
    %v402 = vadd.f32 %v400, 1.0
    %v403 = vrcp.pop %v401
    %v404 = vmul.f32 %v401, %v403
    %v405 = vsub.f32 1.0, %v404
    %v406 = vmul.f32 %v403, %v405
    %v407 = vadd.f32 %v403, %v406
    %vm408 = vweird.f32 %v401
    %vm409 = vweird.f32 %v403
    %vm410 = vmor %vm408, %vm409
    %v411 = vsel %vm410, %v403, %v407
    %v412 = vand.u32 2147483647, %v401
    %vm413 = vcmp.eq.f32.partialorder %v412, 8.507059e+37
    %v414 = vand.u32 %v401, 2147483648
    %v415 = vor.u32 1.1754944e-38, %v414
    %v416 = vsel %vm413, %v415, %v411
    %v417 = vmul.f32 1.0, %v416
    %v418 = vrcp.pop %v402
    %v419 = vmul.f32 %v402, %v418
    %v420 = vsub.f32 1.0, %v419
    %v421 = vmul.f32 %v418, %v420
    %v422 = vadd.f32 %v418, %v421
    %vm423 = vweird.f32 %v402
    %vm424 = vweird.f32 %v418
    %vm425 = vmor %vm423, %vm424
    %v426 = vsel %vm425, %v418, %v422
    %v427 = vand.u32 2147483647, %v402
    %vm428 = vcmp.eq.f32.partialorder %v427, 8.507059e+37
    %v429 = vand.u32 %v402, 2147483648
    %v430 = vor.u32 1.1754944e-38, %v429
    %v431 = vsel %vm428, %v430, %v426
    %v432 = vmul.f32 1.0, %v431
    %v433 = vtanh.pop %v393
    %v434 = vtanh.pop %v394
    %v435 = vmul.f32 %v417, %v208
    %v436 = vmul.f32 %v432, %v209
    %439 = vrot.lane.b32.xlu0 %v433, 32
    %v440 = vpop.permute.xlu0 %439
    %441 = vrot.lane.b32.xlu0 %v434, 32
    %v442 = vpop.permute.xlu0 %441
    %v445 = vmul.f32 %v417, %v440
    %v446 = vmul.f32 %v432, %v442
    %449 = vrot.lane.b32.xlu0 %v445, 32
    %v450 = vpop.permute.xlu0 %449
    %451 = vrot.lane.b32.xlu0 %v446, 32
    %v452 = vpop.permute.xlu0 %451
    %v455 = vadd.f32 %v435, %v450
    %v456 = vadd.f32 %v436, %v452
    %v457 = vtanh.pop %v455
    %v458 = vtanh.pop %v456
    %461 = vrot.lane.b32.xlu0 %v457, 32
    %v462 = vpop.permute.xlu0 %461
    %463 = vrot.lane.b32.xlu0 %v458, 32
    %v464 = vpop.permute.xlu0 %463
    %v467 = vmul.f32 %v417, %v462
    %v468 = vmul.f32 %v432, %v464
    %v469 = vpack.c.bf16 %v468, %v467
    %471 = vrot.lane.b32.xlu0 %v373, 64
    %v472 = vpop.permute.xlu0 %471
    %v474 = vsel %vm120, %v472, 0
    %476 = vmatpush.bf16.msra.mxu0 0
    %477 = vmatpush.bf16.msra.mxu0 0
    %478 = vmatpush.bf16.msra.mxu0 0
    %479 = vmatpush.bf16.msra.mxu0 0
    %480 = vmatpush.bf16.msra.mxu0 0
    %481 = vmatpush.bf16.msra.mxu0 0
    %482 = vmatpush.bf16.msra.mxu0 %v237
    %483 = vmatpush.bf16.msra.mxu0 %v236
    %484 = vmatmul.bf16.gmra.mxu0 %v474
    %v485 = vpop.f32.mrf.mxu0
    %v486 = vadd.f32 0.0, %v485
    %v487 = vpop.f32.mrf.mxu0
    %v488 = vadd.f32 0.0, %v487
    %489 = vdwg.mxu0
    %491 = vrot.lane.b32.xlu0 %v469, 64
    %v492 = vpop.permute.xlu0 %491
    %v494 = vsel %vm120, %v492, 0
    %496 = vmatpush.bf16.msra.mxu0 0
    %497 = vmatpush.bf16.msra.mxu0 0
    %498 = vmatpush.bf16.msra.mxu0 0
    %499 = vmatpush.bf16.msra.mxu0 0
    %500 = vmatpush.bf16.msra.mxu0 0
    %501 = vmatpush.bf16.msra.mxu0 0
    %502 = vmatpush.bf16.msra.mxu0 %v269
    %503 = vmatpush.bf16.msra.mxu0 %v268
    %504 = vmatmul.bf16.gmra.mxu0 %v494
    %v505 = vpop.f32.mrf.mxu0
    %v506 = vadd.f32 %v486, %v505
    %v507 = vpop.f32.mrf.mxu0
    %v508 = vadd.f32 %v488, %v507
    %509 = vdwg.mxu0
    %v510 = vadd.f32 %v506, %v89
    %v511 = vadd.f32 %v508, %v89
    %v512 = vxor.u32 %v510, 2147483648
    %v513 = vxor.u32 %v511, 2147483648
    %v514 = vmul.f32 %v512, 1.442695
    %v515 = vpow.pop %v514
    %v516 = vmul.f32 %v513, 1.442695
    %v517 = vpow.pop %v516
    %v518 = vadd.f32 %v515, 1.0
    %v519 = vadd.f32 %v517, 1.0
    %v520 = vrcp.pop %v518
    %v521 = vmul.f32 %v518, %v520
    %v522 = vsub.f32 1.0, %v521
    %v523 = vmul.f32 %v520, %v522
    %v524 = vadd.f32 %v520, %v523
    %vm525 = vweird.f32 %v518
    %vm526 = vweird.f32 %v520
    %vm527 = vmor %vm525, %vm526
    %v528 = vsel %vm527, %v520, %v524
    %v529 = vand.u32 2147483647, %v518
    %vm530 = vcmp.eq.f32.partialorder %v529, 8.507059e+37
    %v531 = vand.u32 %v518, 2147483648
    %v532 = vor.u32 1.1754944e-38, %v531
    %v533 = vsel %vm530, %v532, %v528
    %v534 = vmul.f32 1.0, %v533
    %v535 = vrcp.pop %v519
    %v536 = vmul.f32 %v519, %v535
    %v537 = vsub.f32 1.0, %v536
    %v538 = vmul.f32 %v535, %v537
    %v539 = vadd.f32 %v535, %v538
    %vm540 = vweird.f32 %v519
    %vm541 = vweird.f32 %v535
    %vm542 = vmor %vm540, %vm541
    %v543 = vsel %vm542, %v535, %v539
    %v544 = vand.u32 2147483647, %v519
    %vm545 = vcmp.eq.f32.partialorder %v544, 8.507059e+37
    %v546 = vand.u32 %v519, 2147483648
    %v547 = vor.u32 1.1754944e-38, %v546
    %v548 = vsel %vm545, %v547, %v543
    %v549 = vmul.f32 1.0, %v548
    %v550 = vtanh.pop %v510
    %v551 = vtanh.pop %v511
    %v552 = vmul.f32 %v534, %v359
    %v553 = vmul.f32 %v549, %v360
    %556 = vrot.lane.b32.xlu0 %v550, 32
    %v557 = vpop.permute.xlu0 %556
    %558 = vrot.lane.b32.xlu0 %v551, 32
    %v559 = vpop.permute.xlu0 %558
    %v562 = vmul.f32 %v534, %v557
    %v563 = vmul.f32 %v549, %v559
    %566 = vrot.lane.b32.xlu0 %v562, 32
    %v567 = vpop.permute.xlu0 %566
    %568 = vrot.lane.b32.xlu0 %v563, 32
    %v569 = vpop.permute.xlu0 %568
    %v572 = vadd.f32 %v552, %v567
    %v573 = vadd.f32 %v553, %v569
    %v574 = vtanh.pop %v572
    %v575 = vtanh.pop %v573
    %578 = vrot.lane.b32.xlu0 %v574, 32
    %v579 = vpop.permute.xlu0 %578
    %580 = vrot.lane.b32.xlu0 %v575, 32
    %v581 = vpop.permute.xlu0 %580
    %v584 = vmul.f32 %v534, %v579
    %v585 = vmul.f32 %v549, %v581
    %v586 = vpack.c.bf16 %v585, %v584
    %s587 = scalar_lea.vmem [#allocation7], 16
    %v588 = vld [vmem:[%s587] sm:$0xf]
    %v589 = vld [vmem:[%s587 + $0x4] sm:$0xf]
    %v590 = vunpack.c.l.bf16 %v588
    %v591 = vunpack.c.l.bf16 %v589
    %592 = vmatpush.bf16.msra.mxu0 0
    %593 = vmatpush.bf16.msra.mxu0 0
    %594 = vmatpush.bf16.msra.mxu0 0
    %595 = vmatpush.bf16.msra.mxu0 0
    %596 = vmatpush.bf16.msra.mxu0 0
    %597 = vmatpush.bf16.msra.mxu0 0
    %598 = vmatpush.bf16.msra.mxu0 %v117
    %599 = vmatpush.bf16.msra.mxu0 %v116
    %600 = vmatmul.bf16.gmra.mxu0 %v494
    %v601 = vpop.f32.mrf.mxu0
    %v602 = vadd.f32 0.0, %v601
    %v603 = vpop.f32.mrf.mxu0
    %v604 = vadd.f32 0.0, %v603
    %605 = vdwg.mxu0
    %v606 = vadd.f32 %v590, %v602
    %v607 = vadd.f32 %v591, %v604
    %v608 = vxor.u32 %v606, 2147483648
    %v609 = vxor.u32 %v607, 2147483648
    %v610 = vmul.f32 %v608, 1.442695
    %v611 = vpow.pop %v610
    %v612 = vmul.f32 %v609, 1.442695
    %v613 = vpow.pop %v612
    %v614 = vadd.f32 %v611, 1.0
    %v615 = vadd.f32 %v613, 1.0
    %v616 = vrcp.pop %v614
    %v617 = vmul.f32 %v614, %v616
    %v618 = vsub.f32 1.0, %v617
    %v619 = vmul.f32 %v616, %v618
    %v620 = vadd.f32 %v616, %v619
    %vm621 = vweird.f32 %v614
    %vm622 = vweird.f32 %v616
    %vm623 = vmor %vm621, %vm622
    %v624 = vsel %vm623, %v616, %v620
    %v625 = vand.u32 2147483647, %v614
    %vm626 = vcmp.eq.f32.partialorder %v625, 8.507059e+37
    %v627 = vand.u32 %v614, 2147483648
    %v628 = vor.u32 1.1754944e-38, %v627
    %v629 = vsel %vm626, %v628, %v624
    %v630 = vmul.f32 1.0, %v629
    %v631 = vrcp.pop %v615
    %v632 = vmul.f32 %v615, %v631
    %v633 = vsub.f32 1.0, %v632
    %v634 = vmul.f32 %v631, %v633
    %v635 = vadd.f32 %v631, %v634
    %vm636 = vweird.f32 %v615
    %vm637 = vweird.f32 %v631
    %vm638 = vmor %vm636, %vm637
    %v639 = vsel %vm638, %v631, %v635
    %v640 = vand.u32 2147483647, %v615
    %vm641 = vcmp.eq.f32.partialorder %v640, 8.507059e+37
    %v642 = vand.u32 %v615, 2147483648
    %v643 = vor.u32 1.1754944e-38, %v642
    %v644 = vsel %vm641, %v643, %v639
    %v645 = vmul.f32 1.0, %v644
    %v646 = vtanh.pop %v606
    %v647 = vtanh.pop %v607
    %v648 = vmul.f32 %v630, %v455
    %v649 = vmul.f32 %v645, %v456
    %652 = vrot.lane.b32.xlu0 %v646, 32
    %v653 = vpop.permute.xlu0 %652
    %654 = vrot.lane.b32.xlu0 %v647, 32
    %v655 = vpop.permute.xlu0 %654
    %v658 = vmul.f32 %v630, %v653
    %v659 = vmul.f32 %v645, %v655
    %662 = vrot.lane.b32.xlu0 %v658, 32
    %v663 = vpop.permute.xlu0 %662
    %664 = vrot.lane.b32.xlu0 %v659, 32
    %v665 = vpop.permute.xlu0 %664
    %v668 = vadd.f32 %v648, %v663
    %v669 = vadd.f32 %v649, %v665
    %v670 = vtanh.pop %v668
    %v671 = vtanh.pop %v669
    %674 = vrot.lane.b32.xlu0 %v670, 32
    %v675 = vpop.permute.xlu0 %674
    %676 = vrot.lane.b32.xlu0 %v671, 32
    %v677 = vpop.permute.xlu0 %676
    %v680 = vmul.f32 %v630, %v675
    %v681 = vmul.f32 %v645, %v677
    %v682 = vpack.c.bf16 %v681, %v680
    %684 = vrot.lane.b32.xlu0 %v586, 64
    %v685 = vpop.permute.xlu0 %684
    %v687 = vsel %vm120, %v685, 0
    %689 = vmatpush.bf16.msra.mxu0 0
    %690 = vmatpush.bf16.msra.mxu0 0
    %691 = vmatpush.bf16.msra.mxu0 0
    %692 = vmatpush.bf16.msra.mxu0 0
    %693 = vmatpush.bf16.msra.mxu0 0
    %694 = vmatpush.bf16.msra.mxu0 0
    %695 = vmatpush.bf16.msra.mxu0 %v237
    %696 = vmatpush.bf16.msra.mxu0 %v236
    %697 = vmatmul.bf16.gmra.mxu0 %v687
    %v698 = vpop.f32.mrf.mxu0
    %v699 = vadd.f32 0.0, %v698
    %v700 = vpop.f32.mrf.mxu0
    %v701 = vadd.f32 0.0, %v700
    %702 = vdwg.mxu0
    %704 = vrot.lane.b32.xlu0 %v682, 64
    %v705 = vpop.permute.xlu0 %704
    %v707 = vsel %vm120, %v705, 0
    %709 = vmatpush.bf16.msra.mxu0 0
    %710 = vmatpush.bf16.msra.mxu0 0
    %711 = vmatpush.bf16.msra.mxu0 0
    %712 = vmatpush.bf16.msra.mxu0 0
    %713 = vmatpush.bf16.msra.mxu0 0
    %714 = vmatpush.bf16.msra.mxu0 0
    %715 = vmatpush.bf16.msra.mxu0 %v269
    %716 = vmatpush.bf16.msra.mxu0 %v268
    %717 = vmatmul.bf16.gmra.mxu0 %v707
    %v718 = vpop.f32.mrf.mxu0
    %v719 = vadd.f32 %v699, %v718
    %v720 = vpop.f32.mrf.mxu0
    %v721 = vadd.f32 %v701, %v720
    %722 = vdwg.mxu0
    %v723 = vadd.f32 %v719, %v89
    %v724 = vadd.f32 %v721, %v89
    %v725 = vxor.u32 %v723, 2147483648
    %v726 = vxor.u32 %v724, 2147483648
    %v727 = vmul.f32 %v725, 1.442695
    %v728 = vpow.pop %v727
    %v729 = vmul.f32 %v726, 1.442695
    %v730 = vpow.pop %v729
    %v731 = vadd.f32 %v728, 1.0
    %v732 = vadd.f32 %v730, 1.0
    %v733 = vrcp.pop %v731
    %v734 = vmul.f32 %v731, %v733
    %v735 = vsub.f32 1.0, %v734
    %v736 = vmul.f32 %v733, %v735
    %v737 = vadd.f32 %v733, %v736
    %vm738 = vweird.f32 %v731
    %vm739 = vweird.f32 %v733
    %vm740 = vmor %vm738, %vm739
    %v741 = vsel %vm740, %v733, %v737
    %v742 = vand.u32 2147483647, %v731
    %vm743 = vcmp.eq.f32.partialorder %v742, 8.507059e+37
    %v744 = vand.u32 %v731, 2147483648
    %v745 = vor.u32 1.1754944e-38, %v744
    %v746 = vsel %vm743, %v745, %v741
    %v747 = vmul.f32 1.0, %v746
    %v748 = vrcp.pop %v732
    %v749 = vmul.f32 %v732, %v748
    %v750 = vsub.f32 1.0, %v749
    %v751 = vmul.f32 %v748, %v750
    %v752 = vadd.f32 %v748, %v751
    %vm753 = vweird.f32 %v732
    %vm754 = vweird.f32 %v748
    %vm755 = vmor %vm753, %vm754
    %v756 = vsel %vm755, %v748, %v752
    %v757 = vand.u32 2147483647, %v732
    %vm758 = vcmp.eq.f32.partialorder %v757, 8.507059e+37
    %v759 = vand.u32 %v732, 2147483648
    %v760 = vor.u32 1.1754944e-38, %v759
    %v761 = vsel %vm758, %v760, %v756
    %v762 = vmul.f32 1.0, %v761
    %v763 = vtanh.pop %v723
    %v764 = vtanh.pop %v724
    %v765 = vmul.f32 %v747, %v572
    %v766 = vmul.f32 %v762, %v573
    %769 = vrot.lane.b32.xlu0 %v763, 32
    %v770 = vpop.permute.xlu0 %769
    %771 = vrot.lane.b32.xlu0 %v764, 32
    %v772 = vpop.permute.xlu0 %771
    %v775 = vmul.f32 %v747, %v770
    %v776 = vmul.f32 %v762, %v772
    %779 = vrot.lane.b32.xlu0 %v775, 32
    %v780 = vpop.permute.xlu0 %779
    %781 = vrot.lane.b32.xlu0 %v776, 32
    %v782 = vpop.permute.xlu0 %781
    %v785 = vadd.f32 %v765, %v780
    %v786 = vadd.f32 %v766, %v782
    %v787 = vtanh.pop %v785
    %v788 = vtanh.pop %v786
    %791 = vrot.lane.b32.xlu0 %v787, 32
    %v792 = vpop.permute.xlu0 %791
    %793 = vrot.lane.b32.xlu0 %v788, 32
    %v794 = vpop.permute.xlu0 %793
    %v797 = vmul.f32 %v747, %v792
    %v798 = vmul.f32 %v762, %v794
    %v799 = vpack.c.bf16 %v798, %v797
    %s800 = scalar_lea.vmem [#allocation7], 24
    %v801 = vld [vmem:[%s800] sm:$0xf]
    %v802 = vld [vmem:[%s800 + $0x4] sm:$0xf]
    %v803 = vunpack.c.l.bf16 %v801
    %v804 = vunpack.c.l.bf16 %v802
    %805 = vmatpush.bf16.msra.mxu0 0
    %806 = vmatpush.bf16.msra.mxu0 0
    %807 = vmatpush.bf16.msra.mxu0 0
    %808 = vmatpush.bf16.msra.mxu0 0
    %809 = vmatpush.bf16.msra.mxu0 0
    %810 = vmatpush.bf16.msra.mxu0 0
    %811 = vmatpush.bf16.msra.mxu0 %v117
    %812 = vmatpush.bf16.msra.mxu0 %v116
    %813 = vmatmul.bf16.gmra.mxu0 %v707
    %v814 = vpop.f32.mrf.mxu0
    %v815 = vadd.f32 0.0, %v814
    %v816 = vpop.f32.mrf.mxu0
    %v817 = vadd.f32 0.0, %v816
    %818 = vdwg.mxu0
    %v819 = vadd.f32 %v803, %v815
    %v820 = vadd.f32 %v804, %v817
    %v821 = vxor.u32 %v819, 2147483648
    %v822 = vxor.u32 %v820, 2147483648
    %v823 = vmul.f32 %v821, 1.442695
    %v824 = vpow.pop %v823
    %v825 = vmul.f32 %v822, 1.442695
    %v826 = vpow.pop %v825
    %v827 = vadd.f32 %v824, 1.0
    %v828 = vadd.f32 %v826, 1.0
    %v829 = vrcp.pop %v827
    %v830 = vmul.f32 %v827, %v829
    %v831 = vsub.f32 1.0, %v830
    %v832 = vmul.f32 %v829, %v831
    %v833 = vadd.f32 %v829, %v832
    %vm834 = vweird.f32 %v827
    %vm835 = vweird.f32 %v829
    %vm836 = vmor %vm834, %vm835
    %v837 = vsel %vm836, %v829, %v833
    %v838 = vand.u32 2147483647, %v827
    %vm839 = vcmp.eq.f32.partialorder %v838, 8.507059e+37
    %v840 = vand.u32 %v827, 2147483648
    %v841 = vor.u32 1.1754944e-38, %v840
    %v842 = vsel %vm839, %v841, %v837
    %v843 = vmul.f32 1.0, %v842
    %v844 = vrcp.pop %v828
    %v845 = vmul.f32 %v828, %v844
    %v846 = vsub.f32 1.0, %v845
    %v847 = vmul.f32 %v844, %v846
    %v848 = vadd.f32 %v844, %v847
    %vm849 = vweird.f32 %v828
    %vm850 = vweird.f32 %v844
    %vm851 = vmor %vm849, %vm850
    %v852 = vsel %vm851, %v844, %v848
    %v853 = vand.u32 2147483647, %v828
    %vm854 = vcmp.eq.f32.partialorder %v853, 8.507059e+37
    %v855 = vand.u32 %v828, 2147483648
    %v856 = vor.u32 1.1754944e-38, %v855
    %v857 = vsel %vm854, %v856, %v852
    %v858 = vmul.f32 1.0, %v857
    %v859 = vtanh.pop %v819
    %v860 = vtanh.pop %v820
    %v861 = vmul.f32 %v843, %v668
    %v862 = vmul.f32 %v858, %v669
    %865 = vrot.lane.b32.xlu0 %v859, 32
    %v866 = vpop.permute.xlu0 %865
    %867 = vrot.lane.b32.xlu0 %v860, 32
    %v868 = vpop.permute.xlu0 %867
    %v871 = vmul.f32 %v843, %v866
    %v872 = vmul.f32 %v858, %v868
    %875 = vrot.lane.b32.xlu0 %v871, 32
    %v876 = vpop.permute.xlu0 %875
    %877 = vrot.lane.b32.xlu0 %v872, 32
    %v878 = vpop.permute.xlu0 %877
    %v881 = vadd.f32 %v861, %v876
    %v882 = vadd.f32 %v862, %v878
    %v883 = vtanh.pop %v881
    %v884 = vtanh.pop %v882
    %887 = vrot.lane.b32.xlu0 %v883, 32
    %v888 = vpop.permute.xlu0 %887
    %889 = vrot.lane.b32.xlu0 %v884, 32
    %v890 = vpop.permute.xlu0 %889
    %v893 = vmul.f32 %v843, %v888
    %v894 = vmul.f32 %v858, %v890
    %v895 = vpack.c.bf16 %v894, %v893
    %897 = vrot.lane.b32.xlu0 %v799, 64
    %v898 = vpop.permute.xlu0 %897
    %v900 = vsel %vm120, %v898, 0
    %902 = vmatpush.bf16.msra.mxu0 0
    %903 = vmatpush.bf16.msra.mxu0 0
    %904 = vmatpush.bf16.msra.mxu0 0
    %905 = vmatpush.bf16.msra.mxu0 0
    %906 = vmatpush.bf16.msra.mxu0 0
    %907 = vmatpush.bf16.msra.mxu0 0
    %908 = vmatpush.bf16.msra.mxu0 %v237
    %909 = vmatpush.bf16.msra.mxu0 %v236
    %910 = vmatmul.bf16.gmra.mxu0 %v900
    %v911 = vpop.f32.mrf.mxu0
    %v912 = vadd.f32 0.0, %v911
    %v913 = vpop.f32.mrf.mxu0
    %v914 = vadd.f32 0.0, %v913
    %915 = vdwg.mxu0
    %917 = vrot.lane.b32.xlu0 %v895, 64
    %v918 = vpop.permute.xlu0 %917
    %v920 = vsel %vm120, %v918, 0
    %922 = vmatpush.bf16.msra.mxu0 0
    %923 = vmatpush.bf16.msra.mxu0 0
    %924 = vmatpush.bf16.msra.mxu0 0
    %925 = vmatpush.bf16.msra.mxu0 0
    %926 = vmatpush.bf16.msra.mxu0 0
    %927 = vmatpush.bf16.msra.mxu0 0
    %928 = vmatpush.bf16.msra.mxu0 %v269
    %929 = vmatpush.bf16.msra.mxu0 %v268
    %930 = vmatmul.bf16.gmra.mxu0 %v920
    %v931 = vpop.f32.mrf.mxu0
    %v932 = vadd.f32 %v912, %v931
    %v933 = vpop.f32.mrf.mxu0
    %v934 = vadd.f32 %v914, %v933
    %935 = vdwg.mxu0
    %v936 = vadd.f32 %v932, %v89
    %v937 = vadd.f32 %v934, %v89
    %v938 = vxor.u32 %v936, 2147483648
    %v939 = vxor.u32 %v937, 2147483648
    %v940 = vmul.f32 %v938, 1.442695
    %v941 = vpow.pop %v940
    %v942 = vmul.f32 %v939, 1.442695
    %v943 = vpow.pop %v942
    %v944 = vadd.f32 %v941, 1.0
    %v945 = vadd.f32 %v943, 1.0
    %v946 = vrcp.pop %v944
    %v947 = vmul.f32 %v944, %v946
    %v948 = vsub.f32 1.0, %v947
    %v949 = vmul.f32 %v946, %v948
    %v950 = vadd.f32 %v946, %v949
    %vm951 = vweird.f32 %v944
    %vm952 = vweird.f32 %v946
    %vm953 = vmor %vm951, %vm952
    %v954 = vsel %vm953, %v946, %v950
    %v955 = vand.u32 2147483647, %v944
    %vm956 = vcmp.eq.f32.partialorder %v955, 8.507059e+37
    %v957 = vand.u32 %v944, 2147483648
    %v958 = vor.u32 1.1754944e-38, %v957
    %v959 = vsel %vm956, %v958, %v954
    %v960 = vmul.f32 1.0, %v959
    %v961 = vrcp.pop %v945
    %v962 = vmul.f32 %v945, %v961
    %v963 = vsub.f32 1.0, %v962
    %v964 = vmul.f32 %v961, %v963
    %v965 = vadd.f32 %v961, %v964
    %vm966 = vweird.f32 %v945
    %vm967 = vweird.f32 %v961
    %vm968 = vmor %vm966, %vm967
    %v969 = vsel %vm968, %v961, %v965
    %v970 = vand.u32 2147483647, %v945
    %vm971 = vcmp.eq.f32.partialorder %v970, 8.507059e+37
    %v972 = vand.u32 %v945, 2147483648
    %v973 = vor.u32 1.1754944e-38, %v972
    %v974 = vsel %vm971, %v973, %v969
    %v975 = vmul.f32 1.0, %v974
    %v976 = vtanh.pop %v936
    %v977 = vtanh.pop %v937
    %v978 = vmul.f32 %v960, %v785
    %v979 = vmul.f32 %v975, %v786
    %982 = vrot.lane.b32.xlu0 %v976, 32
    %v983 = vpop.permute.xlu0 %982
    %984 = vrot.lane.b32.xlu0 %v977, 32
    %v985 = vpop.permute.xlu0 %984
    %v988 = vmul.f32 %v960, %v983
    %v989 = vmul.f32 %v975, %v985
    %992 = vrot.lane.b32.xlu0 %v988, 32
    %v993 = vpop.permute.xlu0 %992
    %994 = vrot.lane.b32.xlu0 %v989, 32
    %v995 = vpop.permute.xlu0 %994
    %v998 = vadd.f32 %v978, %v993
    %v999 = vadd.f32 %v979, %v995
    %v1000 = vtanh.pop %v998
    %v1001 = vtanh.pop %v999
    %1004 = vrot.lane.b32.xlu0 %v1000, 32
    %v1005 = vpop.permute.xlu0 %1004
    %1006 = vrot.lane.b32.xlu0 %v1001, 32
    %v1007 = vpop.permute.xlu0 %1006
    %v1010 = vmul.f32 %v960, %v1005
    %v1011 = vmul.f32 %v975, %v1007
    %v1012 = vpack.c.bf16 %v1011, %v1010
    %s1013 = scalar_lea.vmem [#allocation7], 32
    %v1014 = vld [vmem:[%s1013] sm:$0xf]
    %v1015 = vld [vmem:[%s1013 + $0x4] sm:$0xf]
    %v1016 = vunpack.c.l.bf16 %v1014
    %v1017 = vunpack.c.l.bf16 %v1015
    %1018 = vmatpush.bf16.msra.mxu0 0
    %1019 = vmatpush.bf16.msra.mxu0 0
    %1020 = vmatpush.bf16.msra.mxu0 0
    %1021 = vmatpush.bf16.msra.mxu0 0
    %1022 = vmatpush.bf16.msra.mxu0 0
    %1023 = vmatpush.bf16.msra.mxu0 0
    %1024 = vmatpush.bf16.msra.mxu0 %v117
    %1025 = vmatpush.bf16.msra.mxu0 %v116
    %1026 = vmatmul.bf16.gmra.mxu0 %v920
    %v1027 = vpop.f32.mrf.mxu0
    %v1028 = vadd.f32 0.0, %v1027
    %v1029 = vpop.f32.mrf.mxu0
    %v1030 = vadd.f32 0.0, %v1029
    %1031 = vdwg.mxu0
    %v1032 = vadd.f32 %v1016, %v1028
    %v1033 = vadd.f32 %v1017, %v1030
    %v1034 = vxor.u32 %v1032, 2147483648
    %v1035 = vxor.u32 %v1033, 2147483648
    %v1036 = vmul.f32 %v1034, 1.442695
    %v1037 = vpow.pop %v1036
    %v1038 = vmul.f32 %v1035, 1.442695
    %v1039 = vpow.pop %v1038
    %v1040 = vadd.f32 %v1037, 1.0
    %v1041 = vadd.f32 %v1039, 1.0
    %v1042 = vrcp.pop %v1040
    %v1043 = vmul.f32 %v1040, %v1042
    %v1044 = vsub.f32 1.0, %v1043
    %v1045 = vmul.f32 %v1042, %v1044
    %v1046 = vadd.f32 %v1042, %v1045
    %vm1047 = vweird.f32 %v1040
    %vm1048 = vweird.f32 %v1042
    %vm1049 = vmor %vm1047, %vm1048
    %v1050 = vsel %vm1049, %v1042, %v1046
    %v1051 = vand.u32 2147483647, %v1040
    %vm1052 = vcmp.eq.f32.partialorder %v1051, 8.507059e+37
    %v1053 = vand.u32 %v1040, 2147483648
    %v1054 = vor.u32 1.1754944e-38, %v1053
    %v1055 = vsel %vm1052, %v1054, %v1050
    %v1056 = vmul.f32 1.0, %v1055
    %v1057 = vrcp.pop %v1041
    %v1058 = vmul.f32 %v1041, %v1057
    %v1059 = vsub.f32 1.0, %v1058
    %v1060 = vmul.f32 %v1057, %v1059
    %v1061 = vadd.f32 %v1057, %v1060
    %vm1062 = vweird.f32 %v1041
    %vm1063 = vweird.f32 %v1057
    %vm1064 = vmor %vm1062, %vm1063
    %v1065 = vsel %vm1064, %v1057, %v1061
    %v1066 = vand.u32 2147483647, %v1041
    %vm1067 = vcmp.eq.f32.partialorder %v1066, 8.507059e+37
    %v1068 = vand.u32 %v1041, 2147483648
    %v1069 = vor.u32 1.1754944e-38, %v1068
    %v1070 = vsel %vm1067, %v1069, %v1065
    %v1071 = vmul.f32 1.0, %v1070
    %v1072 = vtanh.pop %v1032
    %v1073 = vtanh.pop %v1033
    %v1074 = vmul.f32 %v1056, %v881
    %v1075 = vmul.f32 %v1071, %v882
    %1078 = vrot.lane.b32.xlu0 %v1072, 32
    %v1079 = vpop.permute.xlu0 %1078
    %1080 = vrot.lane.b32.xlu0 %v1073, 32
    %v1081 = vpop.permute.xlu0 %1080
    %v1084 = vmul.f32 %v1056, %v1079
    %v1085 = vmul.f32 %v1071, %v1081
    %1088 = vrot.lane.b32.xlu0 %v1084, 32
    %v1089 = vpop.permute.xlu0 %1088
    %1090 = vrot.lane.b32.xlu0 %v1085, 32
    %v1091 = vpop.permute.xlu0 %1090
    %v1094 = vadd.f32 %v1074, %v1089
    %v1095 = vadd.f32 %v1075, %v1091
    %v1096 = vtanh.pop %v1094
    %v1097 = vtanh.pop %v1095
    %1100 = vrot.lane.b32.xlu0 %v1096, 32
    %v1101 = vpop.permute.xlu0 %1100
    %1102 = vrot.lane.b32.xlu0 %v1097, 32
    %v1103 = vpop.permute.xlu0 %1102
    %v1106 = vmul.f32 %v1056, %v1101
    %v1107 = vmul.f32 %v1071, %v1103
    %v1108 = vpack.c.bf16 %v1107, %v1106
    %1110 = vrot.lane.b32.xlu0 %v1012, 64
    %v1111 = vpop.permute.xlu0 %1110
    %v1113 = vsel %vm120, %v1111, 0
    %1115 = vmatpush.bf16.msra.mxu0 0
    %1116 = vmatpush.bf16.msra.mxu0 0
    %1117 = vmatpush.bf16.msra.mxu0 0
    %1118 = vmatpush.bf16.msra.mxu0 0
    %1119 = vmatpush.bf16.msra.mxu0 0
    %1120 = vmatpush.bf16.msra.mxu0 0
    %1121 = vmatpush.bf16.msra.mxu0 %v237
    %1122 = vmatpush.bf16.msra.mxu0 %v236
    %1123 = vmatmul.bf16.gmra.mxu0 %v1113
    %v1124 = vpop.f32.mrf.mxu0
    %v1125 = vadd.f32 0.0, %v1124
    %v1126 = vpop.f32.mrf.mxu0
    %v1127 = vadd.f32 0.0, %v1126
    %1128 = vdwg.mxu0
    %1130 = vrot.lane.b32.xlu0 %v1108, 64
    %v1131 = vpop.permute.xlu0 %1130
    %v1133 = vsel %vm120, %v1131, 0
    %1135 = vmatpush.bf16.msra.mxu0 0
    %1136 = vmatpush.bf16.msra.mxu0 0
    %1137 = vmatpush.bf16.msra.mxu0 0
    %1138 = vmatpush.bf16.msra.mxu0 0
    %1139 = vmatpush.bf16.msra.mxu0 0
    %1140 = vmatpush.bf16.msra.mxu0 0
    %1141 = vmatpush.bf16.msra.mxu0 %v269
    %1142 = vmatpush.bf16.msra.mxu0 %v268
    %1143 = vmatmul.bf16.gmra.mxu0 %v1133
    %v1144 = vpop.f32.mrf.mxu0
    %v1145 = vadd.f32 %v1125, %v1144
    %v1146 = vpop.f32.mrf.mxu0
    %v1147 = vadd.f32 %v1127, %v1146
    %1148 = vdwg.mxu0
    %v1149 = vadd.f32 %v1145, %v89
    %v1150 = vadd.f32 %v1147, %v89
    %v1151 = vxor.u32 %v1149, 2147483648
    %v1152 = vxor.u32 %v1150, 2147483648
    %v1153 = vmul.f32 %v1151, 1.442695
    %v1154 = vpow.pop %v1153
    %v1155 = vmul.f32 %v1152, 1.442695
    %v1156 = vpow.pop %v1155
    %v1157 = vadd.f32 %v1154, 1.0
    %v1158 = vadd.f32 %v1156, 1.0
    %v1159 = vrcp.pop %v1157
    %v1160 = vmul.f32 %v1157, %v1159
    %v1161 = vsub.f32 1.0, %v1160
    %v1162 = vmul.f32 %v1159, %v1161
    %v1163 = vadd.f32 %v1159, %v1162
    %vm1164 = vweird.f32 %v1157
    %vm1165 = vweird.f32 %v1159
    %vm1166 = vmor %vm1164, %vm1165
    %v1167 = vsel %vm1166, %v1159, %v1163
    %v1168 = vand.u32 2147483647, %v1157
    %vm1169 = vcmp.eq.f32.partialorder %v1168, 8.507059e+37
    %v1170 = vand.u32 %v1157, 2147483648
    %v1171 = vor.u32 1.1754944e-38, %v1170
    %v1172 = vsel %vm1169, %v1171, %v1167
    %v1173 = vmul.f32 1.0, %v1172
    %v1174 = vrcp.pop %v1158
    %v1175 = vmul.f32 %v1158, %v1174
    %v1176 = vsub.f32 1.0, %v1175
    %v1177 = vmul.f32 %v1174, %v1176
    %v1178 = vadd.f32 %v1174, %v1177
    %vm1179 = vweird.f32 %v1158
    %vm1180 = vweird.f32 %v1174
    %vm1181 = vmor %vm1179, %vm1180
    %v1182 = vsel %vm1181, %v1174, %v1178
    %v1183 = vand.u32 2147483647, %v1158
    %vm1184 = vcmp.eq.f32.partialorder %v1183, 8.507059e+37
    %v1185 = vand.u32 %v1158, 2147483648
    %v1186 = vor.u32 1.1754944e-38, %v1185
    %v1187 = vsel %vm1184, %v1186, %v1182
    %v1188 = vmul.f32 1.0, %v1187
    %v1189 = vtanh.pop %v1149
    %v1190 = vtanh.pop %v1150
    %v1191 = vmul.f32 %v1173, %v998
    %v1192 = vmul.f32 %v1188, %v999
    %1195 = vrot.lane.b32.xlu0 %v1189, 32
    %v1196 = vpop.permute.xlu0 %1195
    %1197 = vrot.lane.b32.xlu0 %v1190, 32
    %v1198 = vpop.permute.xlu0 %1197
    %v1201 = vmul.f32 %v1173, %v1196
    %v1202 = vmul.f32 %v1188, %v1198
    %1205 = vrot.lane.b32.xlu0 %v1201, 32
    %v1206 = vpop.permute.xlu0 %1205
    %1207 = vrot.lane.b32.xlu0 %v1202, 32
    %v1208 = vpop.permute.xlu0 %1207
    %v1211 = vadd.f32 %v1191, %v1206
    %v1212 = vadd.f32 %v1192, %v1208
    %v1213 = vtanh.pop %v1211
    %v1214 = vtanh.pop %v1212
    %1217 = vrot.lane.b32.xlu0 %v1213, 32
    %v1218 = vpop.permute.xlu0 %1217
    %1219 = vrot.lane.b32.xlu0 %v1214, 32
    %v1220 = vpop.permute.xlu0 %1219
    %v1223 = vmul.f32 %v1173, %v1218
    %v1224 = vmul.f32 %v1188, %v1220
    %v1225 = vpack.c.bf16 %v1224, %v1223
    %s1226 = scalar_lea.vmem [#allocation7], 40
    %v1227 = vld [vmem:[%s1226] sm:$0xf]
    %v1228 = vld [vmem:[%s1226 + $0x4] sm:$0xf]
    %v1229 = vunpack.c.l.bf16 %v1227
    %v1230 = vunpack.c.l.bf16 %v1228
    %1231 = vmatpush.bf16.msra.mxu0 0
    %1232 = vmatpush.bf16.msra.mxu0 0
    %1233 = vmatpush.bf16.msra.mxu0 0
    %1234 = vmatpush.bf16.msra.mxu0 0
    %1235 = vmatpush.bf16.msra.mxu0 0
    %1236 = vmatpush.bf16.msra.mxu0 0
    %1237 = vmatpush.bf16.msra.mxu0 %v117
    %1238 = vmatpush.bf16.msra.mxu0 %v116
    %1239 = vmatmul.bf16.gmra.mxu0 %v1133
    %v1240 = vpop.f32.mrf.mxu0
    %v1241 = vadd.f32 0.0, %v1240
    %v1242 = vpop.f32.mrf.mxu0
    %v1243 = vadd.f32 0.0, %v1242
    %1244 = vdwg.mxu0
    %v1245 = vadd.f32 %v1229, %v1241
    %v1246 = vadd.f32 %v1230, %v1243
    %v1247 = vxor.u32 %v1245, 2147483648
    %v1248 = vxor.u32 %v1246, 2147483648
    %v1249 = vmul.f32 %v1247, 1.442695
    %v1250 = vpow.pop %v1249
    %v1251 = vmul.f32 %v1248, 1.442695
    %v1252 = vpow.pop %v1251
    %v1253 = vadd.f32 %v1250, 1.0
    %v1254 = vadd.f32 %v1252, 1.0
    %v1255 = vrcp.pop %v1253
    %v1256 = vmul.f32 %v1253, %v1255
    %v1257 = vsub.f32 1.0, %v1256
    %v1258 = vmul.f32 %v1255, %v1257
    %v1259 = vadd.f32 %v1255, %v1258
    %vm1260 = vweird.f32 %v1253
    %vm1261 = vweird.f32 %v1255
    %vm1262 = vmor %vm1260, %vm1261
    %v1263 = vsel %vm1262, %v1255, %v1259
    %v1264 = vand.u32 2147483647, %v1253
    %vm1265 = vcmp.eq.f32.partialorder %v1264, 8.507059e+37
    %v1266 = vand.u32 %v1253, 2147483648
    %v1267 = vor.u32 1.1754944e-38, %v1266
    %v1268 = vsel %vm1265, %v1267, %v1263
    %v1269 = vmul.f32 1.0, %v1268
    %v1270 = vrcp.pop %v1254
    %v1271 = vmul.f32 %v1254, %v1270
    %v1272 = vsub.f32 1.0, %v1271
    %v1273 = vmul.f32 %v1270, %v1272
    %v1274 = vadd.f32 %v1270, %v1273
    %vm1275 = vweird.f32 %v1254
    %vm1276 = vweird.f32 %v1270
    %vm1277 = vmor %vm1275, %vm1276
    %v1278 = vsel %vm1277, %v1270, %v1274
    %v1279 = vand.u32 2147483647, %v1254
    %vm1280 = vcmp.eq.f32.partialorder %v1279, 8.507059e+37
    %v1281 = vand.u32 %v1254, 2147483648
    %v1282 = vor.u32 1.1754944e-38, %v1281
    %v1283 = vsel %vm1280, %v1282, %v1278
    %v1284 = vmul.f32 1.0, %v1283
    %v1285 = vtanh.pop %v1245
    %v1286 = vtanh.pop %v1246
    %v1287 = vmul.f32 %v1269, %v1094
    %v1288 = vmul.f32 %v1284, %v1095
    %1291 = vrot.lane.b32.xlu0 %v1285, 32
    %v1292 = vpop.permute.xlu0 %1291
    %1293 = vrot.lane.b32.xlu0 %v1286, 32
    %v1294 = vpop.permute.xlu0 %1293
    %v1297 = vmul.f32 %v1269, %v1292
    %v1298 = vmul.f32 %v1284, %v1294
    %1301 = vrot.lane.b32.xlu0 %v1297, 32
    %v1302 = vpop.permute.xlu0 %1301
    %1303 = vrot.lane.b32.xlu0 %v1298, 32
    %v1304 = vpop.permute.xlu0 %1303
    %v1307 = vadd.f32 %v1287, %v1302
    %v1308 = vadd.f32 %v1288, %v1304
    %v1309 = vtanh.pop %v1307
    %v1310 = vtanh.pop %v1308
    %1313 = vrot.lane.b32.xlu0 %v1309, 32
    %v1314 = vpop.permute.xlu0 %1313
    %1315 = vrot.lane.b32.xlu0 %v1310, 32
    %v1316 = vpop.permute.xlu0 %1315
    %v1319 = vmul.f32 %v1269, %v1314
    %v1320 = vmul.f32 %v1284, %v1316
    %v1321 = vpack.c.bf16 %v1320, %v1319
    %1323 = vrot.lane.b32.xlu0 %v1225, 64
    %v1324 = vpop.permute.xlu0 %1323
    %v1326 = vsel %vm120, %v1324, 0
    %1328 = vmatpush.bf16.msra.mxu0 0
    %1329 = vmatpush.bf16.msra.mxu0 0
    %1330 = vmatpush.bf16.msra.mxu0 0
    %1331 = vmatpush.bf16.msra.mxu0 0
    %1332 = vmatpush.bf16.msra.mxu0 0
    %1333 = vmatpush.bf16.msra.mxu0 0
    %1334 = vmatpush.bf16.msra.mxu0 %v237
    %1335 = vmatpush.bf16.msra.mxu0 %v236
    %1336 = vmatmul.bf16.gmra.mxu0 %v1326
    %v1337 = vpop.f32.mrf.mxu0
    %v1338 = vadd.f32 0.0, %v1337
    %v1339 = vpop.f32.mrf.mxu0
    %v1340 = vadd.f32 0.0, %v1339
    %1341 = vdwg.mxu0
    %1343 = vrot.lane.b32.xlu0 %v1321, 64
    %v1344 = vpop.permute.xlu0 %1343
    %v1346 = vsel %vm120, %v1344, 0
    %1348 = vmatpush.bf16.msra.mxu0 0
    %1349 = vmatpush.bf16.msra.mxu0 0
    %1350 = vmatpush.bf16.msra.mxu0 0
    %1351 = vmatpush.bf16.msra.mxu0 0
    %1352 = vmatpush.bf16.msra.mxu0 0
    %1353 = vmatpush.bf16.msra.mxu0 0
    %1354 = vmatpush.bf16.msra.mxu0 %v269
    %1355 = vmatpush.bf16.msra.mxu0 %v268
    %1356 = vmatmul.bf16.gmra.mxu0 %v1346
    %v1357 = vpop.f32.mrf.mxu0
    %v1358 = vadd.f32 %v1338, %v1357
    %v1359 = vpop.f32.mrf.mxu0
    %v1360 = vadd.f32 %v1340, %v1359
    %1361 = vdwg.mxu0
    %v1362 = vadd.f32 %v1358, %v89
    %v1363 = vadd.f32 %v1360, %v89
    %v1364 = vxor.u32 %v1362, 2147483648
    %v1365 = vxor.u32 %v1363, 2147483648
    %v1366 = vmul.f32 %v1364, 1.442695
    %v1367 = vpow.pop %v1366
    %v1368 = vmul.f32 %v1365, 1.442695
    %v1369 = vpow.pop %v1368
    %v1370 = vadd.f32 %v1367, 1.0
    %v1371 = vadd.f32 %v1369, 1.0
    %v1372 = vrcp.pop %v1370
    %v1373 = vmul.f32 %v1370, %v1372
    %v1374 = vsub.f32 1.0, %v1373
    %v1375 = vmul.f32 %v1372, %v1374
    %v1376 = vadd.f32 %v1372, %v1375
    %vm1377 = vweird.f32 %v1370
    %vm1378 = vweird.f32 %v1372
    %vm1379 = vmor %vm1377, %vm1378
    %v1380 = vsel %vm1379, %v1372, %v1376
    %v1381 = vand.u32 2147483647, %v1370
    %vm1382 = vcmp.eq.f32.partialorder %v1381, 8.507059e+37
    %v1383 = vand.u32 %v1370, 2147483648
    %v1384 = vor.u32 1.1754944e-38, %v1383
    %v1385 = vsel %vm1382, %v1384, %v1380
    %v1386 = vmul.f32 1.0, %v1385
    %v1387 = vrcp.pop %v1371
    %v1388 = vmul.f32 %v1371, %v1387
    %v1389 = vsub.f32 1.0, %v1388
    %v1390 = vmul.f32 %v1387, %v1389
    %v1391 = vadd.f32 %v1387, %v1390
    %vm1392 = vweird.f32 %v1371
    %vm1393 = vweird.f32 %v1387
    %vm1394 = vmor %vm1392, %vm1393
    %v1395 = vsel %vm1394, %v1387, %v1391
    %v1396 = vand.u32 2147483647, %v1371
    %vm1397 = vcmp.eq.f32.partialorder %v1396, 8.507059e+37
    %v1398 = vand.u32 %v1371, 2147483648
    %v1399 = vor.u32 1.1754944e-38, %v1398
    %v1400 = vsel %vm1397, %v1399, %v1395
    %v1401 = vmul.f32 1.0, %v1400
    %v1402 = vtanh.pop %v1362
    %v1403 = vtanh.pop %v1363
    %v1404 = vmul.f32 %v1386, %v1211
    %v1405 = vmul.f32 %v1401, %v1212
    %1408 = vrot.lane.b32.xlu0 %v1402, 32
    %v1409 = vpop.permute.xlu0 %1408
    %1410 = vrot.lane.b32.xlu0 %v1403, 32
    %v1411 = vpop.permute.xlu0 %1410
    %v1414 = vmul.f32 %v1386, %v1409
    %v1415 = vmul.f32 %v1401, %v1411
    %1418 = vrot.lane.b32.xlu0 %v1414, 32
    %v1419 = vpop.permute.xlu0 %1418
    %1420 = vrot.lane.b32.xlu0 %v1415, 32
    %v1421 = vpop.permute.xlu0 %1420
    %v1424 = vadd.f32 %v1404, %v1419
    %v1425 = vadd.f32 %v1405, %v1421
    %v1426 = vtanh.pop %v1424
    %v1427 = vtanh.pop %v1425
    %1430 = vrot.lane.b32.xlu0 %v1426, 32
    %v1431 = vpop.permute.xlu0 %1430
    %1432 = vrot.lane.b32.xlu0 %v1427, 32
    %v1433 = vpop.permute.xlu0 %1432
    %v1436 = vmul.f32 %v1386, %v1431
    %v1437 = vmul.f32 %v1401, %v1433
    %v1438 = vpack.c.bf16 %v1437, %v1436
    %s1439 = scalar_lea.vmem [#allocation7], 48
    %v1440 = vld [vmem:[%s1439] sm:$0xf]
    %v1441 = vld [vmem:[%s1439 + $0x4] sm:$0xf]
    %v1442 = vunpack.c.l.bf16 %v1440
    %v1443 = vunpack.c.l.bf16 %v1441
    %1444 = vmatpush.bf16.msra.mxu0 0
    %1445 = vmatpush.bf16.msra.mxu0 0
    %1446 = vmatpush.bf16.msra.mxu0 0
    %1447 = vmatpush.bf16.msra.mxu0 0
    %1448 = vmatpush.bf16.msra.mxu0 0
    %1449 = vmatpush.bf16.msra.mxu0 0
    %1450 = vmatpush.bf16.msra.mxu0 %v117
    %1451 = vmatpush.bf16.msra.mxu0 %v116
    %1452 = vmatmul.bf16.gmra.mxu0 %v1346
    %v1453 = vpop.f32.mrf.mxu0
    %v1454 = vadd.f32 0.0, %v1453
    %v1455 = vpop.f32.mrf.mxu0
    %v1456 = vadd.f32 0.0, %v1455
    %1457 = vdwg.mxu0
    %v1458 = vadd.f32 %v1442, %v1454
    %v1459 = vadd.f32 %v1443, %v1456
    %v1460 = vxor.u32 %v1458, 2147483648
    %v1461 = vxor.u32 %v1459, 2147483648
    %v1462 = vmul.f32 %v1460, 1.442695
    %v1463 = vpow.pop %v1462
    %v1464 = vmul.f32 %v1461, 1.442695
    %v1465 = vpow.pop %v1464
    %v1466 = vadd.f32 %v1463, 1.0
    %v1467 = vadd.f32 %v1465, 1.0
    %v1468 = vrcp.pop %v1466
    %v1469 = vmul.f32 %v1466, %v1468
    %v1470 = vsub.f32 1.0, %v1469
    %v1471 = vmul.f32 %v1468, %v1470
    %v1472 = vadd.f32 %v1468, %v1471
    %vm1473 = vweird.f32 %v1466
    %vm1474 = vweird.f32 %v1468
    %vm1475 = vmor %vm1473, %vm1474
    %v1476 = vsel %vm1475, %v1468, %v1472
    %v1477 = vand.u32 2147483647, %v1466
    %vm1478 = vcmp.eq.f32.partialorder %v1477, 8.507059e+37
    %v1479 = vand.u32 %v1466, 2147483648
    %v1480 = vor.u32 1.1754944e-38, %v1479
    %v1481 = vsel %vm1478, %v1480, %v1476
    %v1482 = vmul.f32 1.0, %v1481
    %v1483 = vrcp.pop %v1467
    %v1484 = vmul.f32 %v1467, %v1483
    %v1485 = vsub.f32 1.0, %v1484
    %v1486 = vmul.f32 %v1483, %v1485
    %v1487 = vadd.f32 %v1483, %v1486
    %vm1488 = vweird.f32 %v1467
    %vm1489 = vweird.f32 %v1483
    %vm1490 = vmor %vm1488, %vm1489
    %v1491 = vsel %vm1490, %v1483, %v1487
    %v1492 = vand.u32 2147483647, %v1467
    %vm1493 = vcmp.eq.f32.partialorder %v1492, 8.507059e+37
    %v1494 = vand.u32 %v1467, 2147483648
    %v1495 = vor.u32 1.1754944e-38, %v1494
    %v1496 = vsel %vm1493, %v1495, %v1491
    %v1497 = vmul.f32 1.0, %v1496
    %v1498 = vtanh.pop %v1458
    %v1499 = vtanh.pop %v1459
    %v1500 = vmul.f32 %v1482, %v1307
    %v1501 = vmul.f32 %v1497, %v1308
    %1504 = vrot.lane.b32.xlu0 %v1498, 32
    %v1505 = vpop.permute.xlu0 %1504
    %1506 = vrot.lane.b32.xlu0 %v1499, 32
    %v1507 = vpop.permute.xlu0 %1506
    %v1510 = vmul.f32 %v1482, %v1505
    %v1511 = vmul.f32 %v1497, %v1507
    %1514 = vrot.lane.b32.xlu0 %v1510, 32
    %v1515 = vpop.permute.xlu0 %1514
    %1516 = vrot.lane.b32.xlu0 %v1511, 32
    %v1517 = vpop.permute.xlu0 %1516
    %v1520 = vadd.f32 %v1500, %v1515
    %v1521 = vadd.f32 %v1501, %v1517
    %v1522 = vtanh.pop %v1520
    %v1523 = vtanh.pop %v1521
    %1526 = vrot.lane.b32.xlu0 %v1522, 32
    %v1527 = vpop.permute.xlu0 %1526
    %1528 = vrot.lane.b32.xlu0 %v1523, 32
    %v1529 = vpop.permute.xlu0 %1528
    %v1532 = vmul.f32 %v1482, %v1527
    %v1533 = vmul.f32 %v1497, %v1529
    %v1534 = vpack.c.bf16 %v1533, %v1532
    %1536 = vrot.lane.b32.xlu0 %v1438, 64
    %v1537 = vpop.permute.xlu0 %1536
    %v1539 = vsel %vm120, %v1537, 0
    %1541 = vmatpush.bf16.msra.mxu0 0
    %1542 = vmatpush.bf16.msra.mxu0 0
    %1543 = vmatpush.bf16.msra.mxu0 0
    %1544 = vmatpush.bf16.msra.mxu0 0
    %1545 = vmatpush.bf16.msra.mxu0 0
    %1546 = vmatpush.bf16.msra.mxu0 0
    %1547 = vmatpush.bf16.msra.mxu0 %v237
    %1548 = vmatpush.bf16.msra.mxu0 %v236
    %1549 = vmatmul.bf16.gmra.mxu0 %v1539
    %v1550 = vpop.f32.mrf.mxu0
    %v1551 = vadd.f32 0.0, %v1550
    %v1552 = vpop.f32.mrf.mxu0
    %v1553 = vadd.f32 0.0, %v1552
    %1554 = vdwg.mxu0
    %1556 = vrot.lane.b32.xlu0 %v1534, 64
    %v1557 = vpop.permute.xlu0 %1556
    %v1559 = vsel %vm120, %v1557, 0
    %1561 = vmatpush.bf16.msra.mxu0 0
    %1562 = vmatpush.bf16.msra.mxu0 0
    %1563 = vmatpush.bf16.msra.mxu0 0
    %1564 = vmatpush.bf16.msra.mxu0 0
    %1565 = vmatpush.bf16.msra.mxu0 0
    %1566 = vmatpush.bf16.msra.mxu0 0
    %1567 = vmatpush.bf16.msra.mxu0 %v269
    %1568 = vmatpush.bf16.msra.mxu0 %v268
    %1569 = vmatmul.bf16.gmra.mxu0 %v1559
    %v1570 = vpop.f32.mrf.mxu0
    %v1571 = vadd.f32 %v1551, %v1570
    %v1572 = vpop.f32.mrf.mxu0
    %v1573 = vadd.f32 %v1553, %v1572
    %1574 = vdwg.mxu0
    %v1575 = vadd.f32 %v1571, %v89
    %v1576 = vadd.f32 %v1573, %v89
    %v1577 = vxor.u32 %v1575, 2147483648
    %v1578 = vxor.u32 %v1576, 2147483648
    %v1579 = vmul.f32 %v1577, 1.442695
    %v1580 = vpow.pop %v1579
    %v1581 = vmul.f32 %v1578, 1.442695
    %v1582 = vpow.pop %v1581
    %v1583 = vadd.f32 %v1580, 1.0
    %v1584 = vadd.f32 %v1582, 1.0
    %v1585 = vrcp.pop %v1583
    %v1586 = vmul.f32 %v1583, %v1585
    %v1587 = vsub.f32 1.0, %v1586
    %v1588 = vmul.f32 %v1585, %v1587
    %v1589 = vadd.f32 %v1585, %v1588
    %vm1590 = vweird.f32 %v1583
    %vm1591 = vweird.f32 %v1585
    %vm1592 = vmor %vm1590, %vm1591
    %v1593 = vsel %vm1592, %v1585, %v1589
    %v1594 = vand.u32 2147483647, %v1583
    %vm1595 = vcmp.eq.f32.partialorder %v1594, 8.507059e+37
    %v1596 = vand.u32 %v1583, 2147483648
    %v1597 = vor.u32 1.1754944e-38, %v1596
    %v1598 = vsel %vm1595, %v1597, %v1593
    %v1599 = vmul.f32 1.0, %v1598
    %v1600 = vrcp.pop %v1584
    %v1601 = vmul.f32 %v1584, %v1600
    %v1602 = vsub.f32 1.0, %v1601
    %v1603 = vmul.f32 %v1600, %v1602
    %v1604 = vadd.f32 %v1600, %v1603
    %vm1605 = vweird.f32 %v1584
    %vm1606 = vweird.f32 %v1600
    %vm1607 = vmor %vm1605, %vm1606
    %v1608 = vsel %vm1607, %v1600, %v1604
    %v1609 = vand.u32 2147483647, %v1584
    %vm1610 = vcmp.eq.f32.partialorder %v1609, 8.507059e+37
    %v1611 = vand.u32 %v1584, 2147483648
    %v1612 = vor.u32 1.1754944e-38, %v1611
    %v1613 = vsel %vm1610, %v1612, %v1608
    %v1614 = vmul.f32 1.0, %v1613
    %v1615 = vtanh.pop %v1575
    %v1616 = vtanh.pop %v1576
    %v1617 = vmul.f32 %v1599, %v1424
    %v1618 = vmul.f32 %v1614, %v1425
    %1621 = vrot.lane.b32.xlu0 %v1615, 32
    %v1622 = vpop.permute.xlu0 %1621
    %1623 = vrot.lane.b32.xlu0 %v1616, 32
    %v1624 = vpop.permute.xlu0 %1623
    %v1627 = vmul.f32 %v1599, %v1622
    %v1628 = vmul.f32 %v1614, %v1624
    %1631 = vrot.lane.b32.xlu0 %v1627, 32
    %v1632 = vpop.permute.xlu0 %1631
    %1633 = vrot.lane.b32.xlu0 %v1628, 32
    %v1634 = vpop.permute.xlu0 %1633
    %v1637 = vadd.f32 %v1617, %v1632
    %v1638 = vadd.f32 %v1618, %v1634
    %v1639 = vtanh.pop %v1637
    %v1640 = vtanh.pop %v1638
    %1643 = vrot.lane.b32.xlu0 %v1639, 32
    %v1644 = vpop.permute.xlu0 %1643
    %1645 = vrot.lane.b32.xlu0 %v1640, 32
    %v1646 = vpop.permute.xlu0 %1645
    %v1649 = vmul.f32 %v1599, %v1644
    %v1650 = vmul.f32 %v1614, %v1646
    %v1651 = vpack.c.bf16 %v1650, %v1649
    %s1652 = scalar_lea.vmem [#allocation7], 56
    %v1653 = vld [vmem:[%s1652] sm:$0xf]
    %v1654 = vld [vmem:[%s1652 + $0x4] sm:$0xf]
    %v1655 = vunpack.c.l.bf16 %v1653
    %v1656 = vunpack.c.l.bf16 %v1654
    %1657 = vmatpush.bf16.msra.mxu0 0
    %1658 = vmatpush.bf16.msra.mxu0 0
    %1659 = vmatpush.bf16.msra.mxu0 0
    %1660 = vmatpush.bf16.msra.mxu0 0
    %1661 = vmatpush.bf16.msra.mxu0 0
    %1662 = vmatpush.bf16.msra.mxu0 0
    %1663 = vmatpush.bf16.msra.mxu0 %v117
    %1664 = vmatpush.bf16.msra.mxu0 %v116
    %1665 = vmatmul.bf16.gmra.mxu0 %v1559
    %v1666 = vpop.f32.mrf.mxu0
    %v1667 = vadd.f32 0.0, %v1666
    %v1668 = vpop.f32.mrf.mxu0
    %v1669 = vadd.f32 0.0, %v1668
    %1670 = vdwg.mxu0
    %v1671 = vadd.f32 %v1655, %v1667
    %v1672 = vadd.f32 %v1656, %v1669
    %v1673 = vxor.u32 %v1671, 2147483648
    %v1674 = vxor.u32 %v1672, 2147483648
    %v1675 = vmul.f32 %v1673, 1.442695
    %v1676 = vpow.pop %v1675
    %v1677 = vmul.f32 %v1674, 1.442695
    %v1678 = vpow.pop %v1677
    %v1679 = vadd.f32 %v1676, 1.0
    %v1680 = vadd.f32 %v1678, 1.0
    %v1681 = vrcp.pop %v1679
    %v1682 = vmul.f32 %v1679, %v1681
    %v1683 = vsub.f32 1.0, %v1682
    %v1684 = vmul.f32 %v1681, %v1683
    %v1685 = vadd.f32 %v1681, %v1684
    %vm1686 = vweird.f32 %v1679
    %vm1687 = vweird.f32 %v1681
    %vm1688 = vmor %vm1686, %vm1687
    %v1689 = vsel %vm1688, %v1681, %v1685
    %v1690 = vand.u32 2147483647, %v1679
    %vm1691 = vcmp.eq.f32.partialorder %v1690, 8.507059e+37
    %v1692 = vand.u32 %v1679, 2147483648
    %v1693 = vor.u32 1.1754944e-38, %v1692
    %v1694 = vsel %vm1691, %v1693, %v1689
    %v1695 = vmul.f32 1.0, %v1694
    %v1696 = vrcp.pop %v1680
    %v1697 = vmul.f32 %v1680, %v1696
    %v1698 = vsub.f32 1.0, %v1697
    %v1699 = vmul.f32 %v1696, %v1698
    %v1700 = vadd.f32 %v1696, %v1699
    %vm1701 = vweird.f32 %v1680
    %vm1702 = vweird.f32 %v1696
    %vm1703 = vmor %vm1701, %vm1702
    %v1704 = vsel %vm1703, %v1696, %v1700
    %v1705 = vand.u32 2147483647, %v1680
    %vm1706 = vcmp.eq.f32.partialorder %v1705, 8.507059e+37
    %v1707 = vand.u32 %v1680, 2147483648
    %v1708 = vor.u32 1.1754944e-38, %v1707
    %v1709 = vsel %vm1706, %v1708, %v1704
    %v1710 = vmul.f32 1.0, %v1709
    %v1711 = vtanh.pop %v1671
    %v1712 = vtanh.pop %v1672
    %v1713 = vmul.f32 %v1695, %v1520
    %v1714 = vmul.f32 %v1710, %v1521
    %1717 = vrot.lane.b32.xlu0 %v1711, 32
    %v1718 = vpop.permute.xlu0 %1717
    %1719 = vrot.lane.b32.xlu0 %v1712, 32
    %v1720 = vpop.permute.xlu0 %1719
    %v1723 = vmul.f32 %v1695, %v1718
    %v1724 = vmul.f32 %v1710, %v1720
    %1727 = vrot.lane.b32.xlu0 %v1723, 32
    %v1728 = vpop.permute.xlu0 %1727
    %1729 = vrot.lane.b32.xlu0 %v1724, 32
    %v1730 = vpop.permute.xlu0 %1729
    %v1733 = vadd.f32 %v1713, %v1728
    %v1734 = vadd.f32 %v1714, %v1730
    %v1735 = vtanh.pop %v1733
    %v1736 = vtanh.pop %v1734
    %1739 = vrot.lane.b32.xlu0 %v1735, 32
    %v1740 = vpop.permute.xlu0 %1739
    %1741 = vrot.lane.b32.xlu0 %v1736, 32
    %v1742 = vpop.permute.xlu0 %1741
    %v1745 = vmul.f32 %v1695, %v1740
    %v1746 = vmul.f32 %v1710, %v1742
    %v1747 = vpack.c.bf16 %v1745, %v1745
    %v1748 = vpack.c.bf16 %v1746, %v1746
    %1750 = vrot.lane.b32.xlu0 %v1651, 64
    %v1751 = vpop.permute.xlu0 %1750
    %v1753 = vsel %vm120, %v1751, 0
    %1755 = vmatpush.bf16.msra.mxu0 0
    %1756 = vmatpush.bf16.msra.mxu0 0
    %1757 = vmatpush.bf16.msra.mxu0 0
    %1758 = vmatpush.bf16.msra.mxu0 0
    %1759 = vmatpush.bf16.msra.mxu0 0
    %1760 = vmatpush.bf16.msra.mxu0 0
    %1761 = vmatpush.bf16.msra.mxu0 %v237
    %1762 = vmatpush.bf16.msra.mxu0 %v236
    %1763 = vmatmul.bf16.gmra.mxu0 %v1753
    %v1764 = vpop.f32.mrf.mxu0
    %v1765 = vadd.f32 0.0, %v1764
    %v1766 = vpop.f32.mrf.mxu0
    %v1767 = vadd.f32 0.0, %v1766
    %1768 = vdwg.mxu0
    %v1771 = vunpack.c.l.b16 %v1747
    %v1772 = vunpack.c.l.b16 %v1748
    %v1773 = vpack.c.b16 %v1772, %v1771
    %1774 = vrot.lane.b32.xlu0 %v1773, 64
    %v1775 = vpop.permute.xlu0 %1774
    %v1777 = vsel %vm120, %v1775, 0
    %1779 = vmatpush.bf16.msra.mxu0 0
    %1780 = vmatpush.bf16.msra.mxu0 0
    %1781 = vmatpush.bf16.msra.mxu0 0
    %1782 = vmatpush.bf16.msra.mxu0 0
    %1783 = vmatpush.bf16.msra.mxu0 0
    %1784 = vmatpush.bf16.msra.mxu0 0
    %1785 = vmatpush.bf16.msra.mxu0 %v269
    %1786 = vmatpush.bf16.msra.mxu0 %v268
    %1787 = vmatmul.bf16.gmra.mxu0 %v1777
    %v1788 = vpop.f32.mrf.mxu0
    %v1789 = vadd.f32 %v1765, %v1788
    %v1790 = vpop.f32.mrf.mxu0
    %v1791 = vadd.f32 %v1767, %v1790
    %1792 = vdwg.mxu0
    %v1793 = vadd.f32 %v1789, %v89
    %v1794 = vadd.f32 %v1791, %v89
    %v1795 = vxor.u32 %v1793, 2147483648
    %v1796 = vxor.u32 %v1794, 2147483648
    %v1797 = vmul.f32 %v1795, 1.442695
    %v1798 = vpow.pop %v1797
    %v1799 = vmul.f32 %v1796, 1.442695
    %v1800 = vpow.pop %v1799
    %v1801 = vadd.f32 %v1798, 1.0
    %v1802 = vadd.f32 %v1800, 1.0
    %v1803 = vrcp.pop %v1801
    %v1804 = vmul.f32 %v1801, %v1803
    %v1805 = vsub.f32 1.0, %v1804
    %v1806 = vmul.f32 %v1803, %v1805
    %v1807 = vadd.f32 %v1803, %v1806
    %vm1808 = vweird.f32 %v1801
    %vm1809 = vweird.f32 %v1803
    %vm1810 = vmor %vm1808, %vm1809
    %v1811 = vsel %vm1810, %v1803, %v1807
    %v1812 = vand.u32 2147483647, %v1801
    %vm1813 = vcmp.eq.f32.partialorder %v1812, 8.507059e+37
    %v1814 = vand.u32 %v1801, 2147483648
    %v1815 = vor.u32 1.1754944e-38, %v1814
    %v1816 = vsel %vm1813, %v1815, %v1811
    %v1817 = vmul.f32 1.0, %v1816
    %v1818 = vrcp.pop %v1802
    %v1819 = vmul.f32 %v1802, %v1818
    %v1820 = vsub.f32 1.0, %v1819
    %v1821 = vmul.f32 %v1818, %v1820
    %v1822 = vadd.f32 %v1818, %v1821
    %vm1823 = vweird.f32 %v1802
    %vm1824 = vweird.f32 %v1818
    %vm1825 = vmor %vm1823, %vm1824
    %v1826 = vsel %vm1825, %v1818, %v1822
    %v1827 = vand.u32 2147483647, %v1802
    %vm1828 = vcmp.eq.f32.partialorder %v1827, 8.507059e+37
    %v1829 = vand.u32 %v1802, 2147483648
    %v1830 = vor.u32 1.1754944e-38, %v1829
    %v1831 = vsel %vm1828, %v1830, %v1826
    %v1832 = vmul.f32 1.0, %v1831
    %v1833 = vtanh.pop %v1793
    %v1834 = vtanh.pop %v1794
    %v1835 = vmul.f32 %v1817, %v1637
    %v1836 = vmul.f32 %v1832, %v1638
    %1839 = vrot.lane.b32.xlu0 %v1833, 32
    %v1840 = vpop.permute.xlu0 %1839
    %1841 = vrot.lane.b32.xlu0 %v1834, 32
    %v1842 = vpop.permute.xlu0 %1841
    %v1845 = vmul.f32 %v1817, %v1840
    %v1846 = vmul.f32 %v1832, %v1842
    %1849 = vrot.lane.b32.xlu0 %v1845, 32
    %v1850 = vpop.permute.xlu0 %1849
    %1851 = vrot.lane.b32.xlu0 %v1846, 32
    %v1852 = vpop.permute.xlu0 %1851
    %v1855 = vadd.f32 %v1835, %v1850
    %v1856 = vadd.f32 %v1836, %v1852
    %v1857 = vtanh.pop %v1855
    %v1858 = vtanh.pop %v1856
    %1861 = vrot.lane.b32.xlu0 %v1857, 32
    %v1862 = vpop.permute.xlu0 %1861
    %1863 = vrot.lane.b32.xlu0 %v1858, 32
    %v1864 = vpop.permute.xlu0 %1863
    %v1867 = vmul.f32 %v1817, %v1862
    %v1868 = vmul.f32 %v1832, %v1864
    %v1869 = vpack.c.bf16 %v1867, %v1867
    %v1870 = vpack.c.bf16 %v1868, %v1868
    %1871 = vrot.lane.b32.xlu0 %v1747, 64
    %v1872 = vpop.permute.xlu0 %1871
    %1873 = vrot.lane.b32.xlu0 %v1748, 64
    %v1874 = vpop.permute.xlu0 %1873
    %vm1877 = vcmask 257024
    %1878 = vst.msk [vmem:[#allocation2] sm:$0xf] %vm1877, %v1872
    %1879 = vst.msk [vmem:[#allocation2 + $0x4] sm:$0xf] %vm1877, %v1874
    %1882 = vrot.lane.b32.xlu0 %v1733, 96
    %v1883 = vpop.permute.xlu0 %1882
    %1884 = vrot.lane.b32.xlu0 %v1734, 96
    %v1885 = vpop.permute.xlu0 %1884
    %1888 = vst.msk [vmem:[#allocation3] sm:$0xff] %vm120, %v1883
    %1889 = vst.msk [vmem:[#allocation3 + $0x8] sm:$0xff] %vm120, %v1885
    %1892 = vrot.lane.b32.xlu0 %v1869, 64
    %v1893 = vpop.permute.xlu0 %1892
    %1894 = vrot.lane.b32.xlu0 %v1870, 64
    %v1895 = vpop.permute.xlu0 %1894
    %1898 = vst.msk [vmem:[#allocation4] sm:$0xf] %vm1877, %v1893
    %1899 = vst.msk [vmem:[#allocation4 + $0x4] sm:$0xf] %vm1877, %v1895
    %1902 = vrot.lane.b32.xlu0 %v1855, 96
    %v1903 = vpop.permute.xlu0 %1902
    %1904 = vrot.lane.b32.xlu0 %v1856, 96
    %v1905 = vpop.permute.xlu0 %1904
    %1908 = vst.msk [vmem:[#allocation5] sm:$0xff] %vm120, %v1903
    %1909 = vst.msk [vmem:[#allocation5 + $0x8] sm:$0xff] %vm120, %v1905
    // Predicated region
    $region42: #{tpu_custom_call.1} parent=1 // pred_check
      %p1910 = pneg %p61
    $region43: #{tpu_custom_call.1} parent=1 // pred_check_branch
      %1912 = sbr.rel (%p1910) target = $region45
    $region44: #{tpu_custom_call.1} parent=1 // pred_region
      %v1913 = vunpack.c.l.bf16 %v1869
      %v1914 = vunpack.c.l.bf16 %v1870
      %v1915 = vld [vmem:[%s5] sm:$0xff]
      %v1916 = vld [vmem:[%s5 + $0x8] sm:$0xff]
      %v1917 = vld [vmem:[%s5 + $0x10] sm:$0xff]
      %v1918 = vld [vmem:[%s5 + $0x18] sm:$0xff]
      %v1919 = vld [vmem:[#allocation6] sm:$0x1]
      %v1921 = vperm.slane %v1919, 0
      %1925 = vrot.lane.b32.xlu0 %v1913, 64
      %v1926 = vpop.permute.xlu0 %1925
      %1927 = vrot.lane.b32.xlu0 %v1914, 64
      %v1928 = vpop.permute.xlu0 %1927
      %v1929 = vsel %vm120, %v1926, 0
      %v1931 = vsel %vm120, %v1928, 0
      %1933 = vmatpush.msra.mxu0 0.0
      %1934 = vmatpush.msra.mxu0 0.0
      %1935 = vmatpush.msra.mxu0 0.0
      %1936 = vmatpush.msra.mxu0 0.0
      %1937 = vmatpush.msra.mxu0 0.0
      %1938 = vmatpush.msra.mxu0 0.0
      %1939 = vmatpush.msra.mxu0 0.0
      %1940 = vmatpush.msra.mxu0 0.0
      %1941 = vmatpush.msra.mxu0 0.0
      %1942 = vmatpush.msra.mxu0 0.0
      %1943 = vmatpush.msra.mxu0 0.0
      %1944 = vmatpush.msra.mxu0 0.0
      %1945 = vmatpush.msra.mxu0 %v1918
      %1946 = vmatpush.msra.mxu0 %v1917
      %1947 = vmatpush.msra.mxu0 %v1916
      %1948 = vmatpush.msra.mxu0 %v1915
      %1949 = vmatmul.f32.gmra.mxu0 %v1929
      %v1950 = vpop.f32.mrf.mxu0
      %v1951 = vadd.f32 %v1921, %v1950
      %1952 = vmatmul.f32.gmra.mxu0 %v1931
      %v1953 = vpop.f32.mrf.mxu0
      %v1954 = vadd.f32 %v1921, %v1953
      %1955 = vdwg.mxu0
      %vm1956 = vcmask 7168
      %1957 = vst.msk [vmem:[%s7] sm:$0xff] %vm1956, %v1951
      %1958 = vst.msk [vmem:[%s7 + $0x8] sm:$0xff] %vm1956, %v1954
    $region45: #{tpu_custom_call.1} parent=1 // pred_fallthru
      _
    // Predicated region
    $region46: #{tpu_custom_call.1} parent=1 // pred_check
      _
    $region47: #{tpu_custom_call.1} parent=1 // pred_check_branch
      %1960 = sbr.rel (0) target = $region49
    $region48: #{tpu_custom_call.1} parent=1 // pred_region
      _
    $region49: #{tpu_custom_call.1} parent=1 // pred_fallthru
      _
    // Predicated region
    $region50: #{tpu_custom_call.1} parent=1 // pred_check
      _
    $region51: #{tpu_custom_call.1} parent=1 // pred_check_branch
      %1962 = sbr.rel (0) target = $region53
    $region52: #{tpu_custom_call.1} parent=1 // pred_region
      _
    $region53: #{tpu_custom_call.1} parent=1 // pred_fallthru
      _
    %1963 = vsyncpa [#allocation8], 1
    %1964 = vsyncpa [#allocation10], 1

</llo_original>
